<compile_context>
chip_gen: v7x
topology: tpu7x:2x2x1
jax: 0.10.0
libtpu: 0.0.40
codegen_flags: <defaults>
</compile_context>

<pallas_src>
import functools

import jax
import jax.numpy as jnp
from jax.experimental import pallas as pl
from jax.experimental.pallas import tpu as pltpu


# ----------------------------- Pallas kernel --------------------------------
def lstm_sentiment_kernel(x_ref, wih_ref, whh_ref, b_ref, wout_ref, bout_ref,
                          out_ref, h_scr, c_scr, *, unroll):
    """Grid = (batch_blocks, time_chunks).
    x_ref:    (TC, BB, E)  embedded inputs for this (batch, time) block
    wih_ref:  (E,  GT)     input->gates weights  (gate k at lanes [k*GS, k*GS+H))
    whh_ref:  (GS, GT)     hidden->gates weights
    b_ref:    (1,  GT)     combined bias b_ih + b_hh (f32)
    wout_ref: (GS, LP)     hidden->label weights (lane-dense padded)
    bout_ref: (1,  LP)
    out_ref:  (BB, LP)     logits (written only on the last time chunk)
    h_scr/c_scr: (BB, GS)  f32 LSTM state carried across time chunks
    """
    TC, BB, _ = x_ref.shape
    GS = h_scr.shape[1]
    GT = whh_ref.shape[1]
    t_idx = pl.program_id(1)

    @pl.when(t_idx == 0)
    def _init():
        h_scr[...] = jnp.zeros_like(h_scr)
        c_scr[...] = jnp.zeros_like(c_scr)

    # Hoist the bias broadcast out of the loop (broadcast_in_dim is not CSE'd).
    bias = jnp.broadcast_to(b_ref[...], (BB, GT))

    def step(t, carry):
        # Per-timestep input projection.  Independent of the h dependency
        # chain, so within each unrolled group the scheduler pushes these MXU
        # ops into the bubbles of the latency-bound recurrence (MXU drain ->
        # EUP sigmoid/tanh -> next h); no (TC, BB, GT) ix buffer needed.
        ix = jnp.dot(x_ref[t], wih_ref[...],
                     preferred_element_type=jnp.float32)
        hw = jnp.dot(h_scr[...].astype(whh_ref.dtype), whh_ref[...],
                     preferred_element_type=jnp.float32)
        gates = ix + hw + bias                                  # (BB, GT) f32
        # PyTorch gate order i, f, g, o at lane stride GS.
        i = jax.nn.sigmoid(gates[:, 0 * GS:1 * GS])
        f = jax.nn.sigmoid(gates[:, 1 * GS:2 * GS])
        g = jnp.tanh(gates[:, 2 * GS:3 * GS])
        o = jax.nn.sigmoid(gates[:, 3 * GS:4 * GS])
        c_new = f * c_scr[...] + i * g
        h_scr[...] = o * jnp.tanh(c_new)
        c_scr[...] = c_new
        return carry

    # Bounded unroll: enough for the scheduler to overlap projection / loads
    # of later steps with the serial h-chain, without exploding code size.
    jax.lax.fori_loop(0, TC, step, 0, unroll=unroll)

    # Final Linear on the last timestep's hidden state (lane-dense store).
    @pl.when(t_idx == pl.num_programs(1) - 1)
    def _finalize():
        out_ref[...] = (jnp.dot(h_scr[...].astype(wout_ref.dtype),
                                wout_ref[...],
                                preferred_element_type=jnp.float32)
                        + bout_ref[...])


# ------------------------------- wrapper -------------------------------------
def _round_up(x, m):
    return ((x + m - 1) // m) * m


def _pick_batch_block(BP, cap=256):
    """Largest multiple-of-8 divisor of BP, <= cap, preferring >= 2 blocks so
    the 'parallel' batch axis can shard across both TensorCores on v7x.
    (Pass batch_block=128 explicitly to cap lower on v5e.)"""
    cands = [bb for bb in range(8, BP + 1, 8) if BP % bb == 0]
    sharded = [bb for bb in cands if bb <= cap and BP // bb >= 2]
    if sharded:
        return max(sharded)
    capped = [bb for bb in cands if bb <= cap]
    return max(capped) if capped else BP


def lstm_sentiment_forward(tokens, params, *, mxu_dtype=jnp.bfloat16,
                           time_chunk=None, batch_block=None,
                           vmem_budget_bytes=32 * 1024 * 1024):
    """tokens: (T, B) int32.  Returns logits (B, num_labels) float32.

    mxu_dtype=bfloat16 (default, good on v5e/v6e/v7x) casts only the matmul
    operands (x, W_ih, W_hh, W_out); state, accumulation and elementwise math
    stay float32.  mxu_dtype=float32 gives exact parity with the reference.
    vmem_budget_bytes is deliberately conservative for v7x (64 MiB physical);
    it can be raised toward ~96 MiB on v5e/v6e.
    """
    emb = params["embedding"]
    w_ih, w_hh = params["w_ih"], params["w_hh"]
    b, w_out, b_out = params["b"], params["w_out"], params["b_out"]

    T, B = tokens.shape
    E = emb.shape[1]
    H = w_hh.shape[0]
    L = w_out.shape[1]

    # Gate layout: GS = per-gate lane stride == width of h/c/W_hh rows.
    #   H >= 128: each gate gets its own 128-aligned block (whole-vreg slices).
    #   H <  128: gates stay packed at stride H (avoid 4x padding waste);
    #             masked sub-vreg slices are fine.
    GS = H if H < 128 else _round_up(H, 128)
    GT = _round_up(4 * GS, 128)     # total gate width (lane-dense)
    LP = _round_up(L, 128)          # lane-dense logits block
    BP = _round_up(B, 8)            # sublane-aligned batch

    # Embedding gather stays in XLA, but x is emitted directly in the MXU
    # dtype so the (T,B,E) HBM round trip is halved on the bf16 path.
    x = jnp.take(emb.astype(mxu_dtype), tokens, axis=0)         # (T, B, E)
    if BP != B:
        x = jnp.pad(x, ((0, 0), (0, BP - B), (0, 0)))

    # Place gate k's H real columns at lanes [k*GS, k*GS+H).  Padded lanes get
    # zero weights & bias => pre-activation 0 => i=f=o=0.5, g=0 => padded c/h
    # lanes stay exactly 0 through the recurrence.
    def layout_gates(w):  # (..., 4H) -> (..., GT)
        parts = jnp.split(w, 4, axis=-1)
        pad = [(0, 0)] * (w.ndim - 1) + [(0, GS - H)]
        out = jnp.concatenate([jnp.pad(p, pad) for p in parts], axis=-1)
        tail = GT - 4 * GS
        if tail:
            out = jnp.pad(out, [(0, 0)] * (w.ndim - 1) + [(0, tail)])
        return out

    w_ih_p = layout_gates(w_ih)                                   # (E, GT)
    w_hh_p = layout_gates(jnp.pad(w_hh, ((0, GS - H), (0, 0))))   # (GS, GT)
    b_p = layout_gates(b).astype(jnp.float32)                     # (1, GT)
    w_out_p = jnp.pad(w_out, ((0, GS - H), (0, LP - L)))          # (GS, LP)
    b_out_p = jnp.pad(b_out, ((0, 0), (0, LP - L))).astype(jnp.float32)

    w_ih_m = w_ih_p.astype(mxu_dtype)
    w_hh_m = w_hh_p.astype(mxu_dtype)
    w_out_m = w_out_p.astype(mxu_dtype)

    # --- batch block (amortize per-step W_hh/W_ih reloads; nb>=2 for v7x).
    BB = batch_block if batch_block is not None else _pick_batch_block(BP)
    assert BP % BB == 0 and BB % 8 == 0
    nb = BP // BB

    # --- time chunk from an explicit VMEM budget.
    dsz = jnp.dtype(mxu_dtype).itemsize
    fixed = (2 * (E * GT + GS * GT + GS * LP) * dsz   # weights (double-buffered)
             + 2 * (GT + LP) * 4                      # biases (f32)
             + 2 * BB * LP * 4                        # output block
             + 2 * BB * GS * 4)                       # h/c scratch
    per_t = 2 * BB * E * dsz                          # x block (double-buffered)
    if time_chunk is None:
        avail = max(vmem_budget_bytes - fixed, per_t)
        TC = int(max(1, min(T, avail // per_t)))
        while T % TC:                                 # largest divisor of T <= TC
            TC -= 1
    else:
        TC = time_chunk
    assert T % TC == 0, "time_chunk must divide T"
    # TODO(synk): ragged T (T % TC != 0) would need per-step validity masking.
    nt = T // TC

    est = fixed + per_t * TC
    # Explicit scoped-VMEM limit (defaults: 16 MiB v5e / 32 MiB v6e, v7x);
    # capped at 48 MiB to leave headroom under v7x's 64 MiB physical VMEM.
    vmem_limit = int(min(max(est + est // 2 + (1 << 20), 16 << 20), 48 << 20))

    unroll = int(max(1, min(TC, 8)))
    kernel = functools.partial(lstm_sentiment_kernel, unroll=unroll)

    out = pl.pallas_call(
        kernel,
        out_shape=jax.ShapeDtypeStruct((BP, LP), jnp.float32),
        grid=(nb, nt),
        in_specs=[
            pl.BlockSpec((TC, BB, E), lambda bi, ti: (ti, bi, 0)),
            pl.BlockSpec((E, GT), lambda bi, ti: (0, 0)),
            pl.BlockSpec((GS, GT), lambda bi, ti: (0, 0)),
            pl.BlockSpec((1, GT), lambda bi, ti: (0, 0)),
            pl.BlockSpec((GS, LP), lambda bi, ti: (0, 0)),
            pl.BlockSpec((1, LP), lambda bi, ti: (0, 0)),
        ],
        out_specs=pl.BlockSpec((BB, LP), lambda bi, ti: (bi, 0)),
        scratch_shapes=[
            pltpu.VMEM((BB, GS), jnp.float32),   # h
            pltpu.VMEM((BB, GS), jnp.float32),   # c
        ],
        # batch axis parallel (megacore shardable), time axis sequential
        # (h/c carried in scratch across time chunks).
        compiler_params=pltpu.CompilerParams(
            dimension_semantics=("parallel", "arbitrary"),
            vmem_limit_bytes=vmem_limit),
    )(x, w_ih_m, w_hh_m, b_p, w_out_m, b_out_p)

    return out[:B, :L]


# --------------------------- pure-JAX reference -------------------------------
def lstm_sentiment_reference(tokens, params):
    x = jnp.take(params["embedding"], tokens, axis=0)  # (T, B, E)
    B = x.shape[1]
    H = params["w_hh"].shape[0]

    def step(carry, x_t):
        h, c = carry
        gates = x_t @ params["w_ih"] + h @ params["w_hh"] + params["b"][0]
        i, f, g, o = jnp.split(gates, 4, axis=-1)
        i, f, o = jax.nn.sigmoid(i), jax.nn.sigmoid(f), jax.nn.sigmoid(o)
        g = jnp.tanh(g)
        c = f * c + i * g
        h = o * jnp.tanh(c)
        return (h, c), None

    init = (jnp.zeros((B, H), jnp.float32), jnp.zeros((B, H), jnp.float32))
    (h_last, _), _ = jax.lax.scan(step, init, x)
    return h_last @ params["w_out"] + params["b_out"][0]


# ----------------------------- param init ------------------------------------
def init_params(key, vocab_size, emb_dim, hidden_dim, num_labels):
    ks = jax.random.split(key, 7)
    s = 1.0 / jnp.sqrt(hidden_dim)
    u = lambda k, shape, scale: jax.random.uniform(
        k, shape, jnp.float32, minval=-scale, maxval=scale)
    return {
        "embedding": jax.random.normal(ks[0], (vocab_size, emb_dim),
                                       jnp.float32),
        # stored as [in_dim, 4H] == torch weight_ih_l0.T (gate order i,f,g,o)
        "w_ih": u(ks[1], (emb_dim, 4 * hidden_dim), s),
        "w_hh": u(ks[2], (hidden_dim, 4 * hidden_dim), s),
        # combined bias b_ih + b_hh, kept 2D (1, 4H)
        "b": u(ks[3], (1, 4 * hidden_dim), s) + u(ks[4], (1, 4 * hidden_dim), s),
        "w_out": u(ks[5], (hidden_dim, num_labels), s),
        "b_out": u(ks[6], (1, num_labels), s),
    }


# --------------------------------- main ---------------------------------------
if __name__ == "__main__":
    SEQ_LEN = 8
    BATCH = 8
    VOCAB = 50
    EMB = 32
    HIDDEN = 32
    NUM_LABELS = 2

    key = jax.random.PRNGKey(0)
    k_tok, k_par = jax.random.split(key)
    tokens = jax.random.randint(k_tok, (SEQ_LEN, BATCH), 0, VOCAB,
                                dtype=jnp.int32)
    params = init_params(k_par, VOCAB, EMB, HIDDEN, NUM_LABELS)

    ref = jax.block_until_ready(lstm_sentiment_reference(tokens, params))

    # f32 MXU path (exact vs reference).
    logits = jax.block_until_ready(
        lstm_sentiment_forward(tokens, params, mxu_dtype=jnp.float32))
    assert logits.shape == (BATCH, NUM_LABELS), logits.shape
    assert jnp.allclose(logits, ref, atol=2e-5, rtol=2e-5), (
        f"f32 max abs err = {jnp.max(jnp.abs(logits - ref))}")

    # Default bf16-MXU path (recommended on v5e/v6e/v7x): matmul operands
    # bf16, state/accumulation/elementwise f32.
    logits_bf16 = jax.block_until_ready(lstm_sentiment_forward(tokens, params))
    assert logits_bf16.shape == (BATCH, NUM_LABELS)
    assert bool(jnp.all(jnp.isfinite(logits_bf16)))
    assert float(jnp.max(jnp.abs(logits_bf16 - ref))) < 0.25, (
        f"bf16 max abs err = {jnp.max(jnp.abs(logits_bf16 - ref))}")

    print("KERNEL_OK")
</pallas_src>

<mosaic_0001>
module attributes {stable_mosaic.version = 11 : i64} {
  func.func @lstm_sentiment_kernel(%arg0: i32, %arg1: i32, %arg2: memref<8x8x32xf32, #tpu.memory_space<vmem>>, %arg3: memref<32x128xf32, #tpu.memory_space<vmem>>, %arg4: memref<32x128xf32, #tpu.memory_space<vmem>>, %arg5: memref<1x128xf32, #tpu.memory_space<vmem>>, %arg6: memref<32x128xf32, #tpu.memory_space<vmem>>, %arg7: memref<1x128xf32, #tpu.memory_space<vmem>>, %arg8: memref<8x128xf32, #tpu.memory_space<vmem>>, %arg9: memref<8x32xf32, #tpu.memory_space<vmem>>, %arg10: memref<8x32xf32, #tpu.memory_space<vmem>>) attributes {dimension_semantics = [#tpu.dimension_semantics<parallel>, #tpu.dimension_semantics<arbitrary>], iteration_bounds = array<i64: 1, 1>, scalar_prefetch = 0 : i64, scratch_operands = 2 : i64, tpu.core_type = #tpu.core_type<tc>, window_params = [{transform_indices = @transform_0, window_bounds = array<i64: 8, 8, 32>}, {pipeline_mode = #tpu.pipeline_mode<synchronous>, transform_indices = @transform_1, window_bounds = array<i64: 32, 128>}, {pipeline_mode = #tpu.pipeline_mode<synchronous>, transform_indices = @transform_2, window_bounds = array<i64: 32, 128>}, {pipeline_mode = #tpu.pipeline_mode<synchronous>, transform_indices = @transform_3, window_bounds = array<i64: 1, 128>}, {pipeline_mode = #tpu.pipeline_mode<synchronous>, transform_indices = @transform_4, window_bounds = array<i64: 32, 128>}, {pipeline_mode = #tpu.pipeline_mode<synchronous>, transform_indices = @transform_5, window_bounds = array<i64: 1, 128>}, {transform_indices = @transform_6, window_bounds = array<i64: 8, 128>}]} {
    %c0_i32 = arith.constant 0 : i32
    %0 = arith.cmpi eq, %arg1, %c0_i32 : i32
    %1 = arith.extui %0 : i1 to i32
    %c0_i32_0 = arith.constant 0 : i32
    %2 = arith.cmpi ne, %1, %c0_i32_0 : i32
    scf.if %2 {
      %cst_156 = arith.constant 0.000000e+00 : f32
      %313 = vector.broadcast %cst_156 : f32 to vector<8x32xf32>
      %c0_157 = arith.constant 0 : index
      %c0_158 = arith.constant 0 : index
      %314 = vector.load %arg9[%c0_157, %c0_158] : memref<8x32xf32, #tpu.memory_space<vmem>>, vector<8x32xf32>
      tpu.vector_store %arg9[%c0_157, %c0_158], %313 {strides = array<i32>} : memref<8x32xf32, #tpu.memory_space<vmem>>, vector<8x32xf32>,
      %cst_159 = arith.constant 0.000000e+00 : f32
      %315 = vector.broadcast %cst_159 : f32 to vector<8x32xf32>
      %c0_160 = arith.constant 0 : index
      %c0_161 = arith.constant 0 : index
      %316 = vector.load %arg10[%c0_160, %c0_161] : memref<8x32xf32, #tpu.memory_space<vmem>>, vector<8x32xf32>
      tpu.vector_store %arg10[%c0_160, %c0_161], %315 {strides = array<i32>} : memref<8x32xf32, #tpu.memory_space<vmem>>, vector<8x32xf32>,
    } else {
    }
    %c0 = arith.constant 0 : index
    %c0_1 = arith.constant 0 : index
    %3 = vector.load %arg5[%c0, %c0_1] : memref<1x128xf32, #tpu.memory_space<vmem>>, vector<1x128xf32>
    %4 = vector.shape_cast %3 : vector<1x128xf32> to vector<1x128xf32>
    %5 = vector.broadcast %4 : vector<1x128xf32> to vector<8x128xf32>
    %c0_i32_2 = arith.constant 0 : i32
    %6 = arith.index_cast %c0_i32_2 : i32 to index
    %c0_3 = arith.constant 0 : index
    %c0_4 = arith.constant 0 : index
    %7 = vector.load %arg2[%6, %c0_3, %c0_4] : memref<8x8x32xf32, #tpu.memory_space<vmem>>, vector<1x8x32xf32>
    %8 = vector.shape_cast %7 : vector<1x8x32xf32> to vector<8x32xf32>
    %c0_5 = arith.constant 0 : index
    %c0_6 = arith.constant 0 : index
    %9 = vector.load %arg3[%c0_5, %c0_6] : memref<32x128xf32, #tpu.memory_space<vmem>>, vector<32x128xf32>
    %cst = arith.constant dense<0.000000e+00> : vector<8x128xf32>
    %10 = tpu.matmul %8, %9, %cst {dimension_numbers = #tpu.dot_dimension_numbers<[1], [0], [0], [1], [0, 0, 1, 1], [], []>} : vector<8x32xf32>, vector<32x128xf32>, vector<8x128xf32> -> vector<8x128xf32>
    %c0_7 = arith.constant 0 : index
    %c0_8 = arith.constant 0 : index
    %11 = vector.load %arg9[%c0_7, %c0_8] : memref<8x32xf32, #tpu.memory_space<vmem>>, vector<8x32xf32>
    %c0_9 = arith.constant 0 : index
    %c0_10 = arith.constant 0 : index
    %12 = vector.load %arg4[%c0_9, %c0_10] : memref<32x128xf32, #tpu.memory_space<vmem>>, vector<32x128xf32>
    %cst_11 = arith.constant dense<0.000000e+00> : vector<8x128xf32>
    %13 = tpu.matmul %11, %12, %cst_11 {dimension_numbers = #tpu.dot_dimension_numbers<[1], [0], [0], [1], [0, 0, 1, 1], [], []>} : vector<8x32xf32>, vector<32x128xf32>, vector<8x128xf32> -> vector<8x128xf32>
    %14 = arith.addf %10, %13 : vector<8x128xf32>
    %15 = arith.addf %14, %5 : vector<8x128xf32>
    %16 = vector.extract_strided_slice %15 {offsets = [0, 0], sizes = [8, 32], strides = [1, 1]} : vector<8x128xf32> to vector<8x32xf32>
    %17 = arith.negf %16 : vector<8x32xf32>
    %18 = math.exp %17 : vector<8x32xf32>
    %cst_12 = arith.constant 1.000000e+00 : f32
    %19 = vector.broadcast %cst_12 : f32 to vector<8x32xf32>
    %20 = arith.addf %19, %18 : vector<8x32xf32>
    %21 = arith.divf %19, %20 : vector<8x32xf32>
    %22 = vector.extract_strided_slice %15 {offsets = [0, 32], sizes = [8, 32], strides = [1, 1]} : vector<8x128xf32> to vector<8x32xf32>
    %23 = arith.negf %22 : vector<8x32xf32>
    %24 = math.exp %23 : vector<8x32xf32>
    %cst_13 = arith.constant 1.000000e+00 : f32
    %25 = vector.broadcast %cst_13 : f32 to vector<8x32xf32>
    %26 = arith.addf %25, %24 : vector<8x32xf32>
    %27 = arith.divf %25, %26 : vector<8x32xf32>
    %28 = vector.extract_strided_slice %15 {offsets = [0, 64], sizes = [8, 32], strides = [1, 1]} : vector<8x128xf32> to vector<8x32xf32>
    %29 = math.tanh %28 : vector<8x32xf32>
    %30 = vector.extract_strided_slice %15 {offsets = [0, 96], sizes = [8, 32], strides = [1, 1]} : vector<8x128xf32> to vector<8x32xf32>
    %31 = arith.negf %30 : vector<8x32xf32>
    %32 = math.exp %31 : vector<8x32xf32>
    %cst_14 = arith.constant 1.000000e+00 : f32
    %33 = vector.broadcast %cst_14 : f32 to vector<8x32xf32>
    %34 = arith.addf %33, %32 : vector<8x32xf32>
    %35 = arith.divf %33, %34 : vector<8x32xf32>
    %c0_15 = arith.constant 0 : index
    %c0_16 = arith.constant 0 : index
    %36 = vector.load %arg10[%c0_15, %c0_16] : memref<8x32xf32, #tpu.memory_space<vmem>>, vector<8x32xf32>
    %37 = arith.mulf %27, %36 : vector<8x32xf32>
    %38 = arith.mulf %21, %29 : vector<8x32xf32>
    %39 = arith.addf %37, %38 : vector<8x32xf32>
    %40 = math.tanh %39 : vector<8x32xf32>
    %41 = arith.mulf %35, %40 : vector<8x32xf32>
    %c0_17 = arith.constant 0 : index
    %c0_18 = arith.constant 0 : index
    %42 = vector.load %arg9[%c0_17, %c0_18] : memref<8x32xf32, #tpu.memory_space<vmem>>, vector<8x32xf32>
    tpu.vector_store %arg9[%c0_17, %c0_18], %41 {strides = array<i32>} : memref<8x32xf32, #tpu.memory_space<vmem>>, vector<8x32xf32>,
    %c0_19 = arith.constant 0 : index
    %c0_20 = arith.constant 0 : index
    %43 = vector.load %arg10[%c0_19, %c0_20] : memref<8x32xf32, #tpu.memory_space<vmem>>, vector<8x32xf32>
    tpu.vector_store %arg10[%c0_19, %c0_20], %39 {strides = array<i32>} : memref<8x32xf32, #tpu.memory_space<vmem>>, vector<8x32xf32>,
    %c1_i32 = arith.constant 1 : i32
    %44 = arith.index_cast %c1_i32 : i32 to index
    %c0_21 = arith.constant 0 : index
    %c0_22 = arith.constant 0 : index
    %45 = vector.load %arg2[%44, %c0_21, %c0_22] : memref<8x8x32xf32, #tpu.memory_space<vmem>>, vector<1x8x32xf32>
    %46 = vector.shape_cast %45 : vector<1x8x32xf32> to vector<8x32xf32>
    %c0_23 = arith.constant 0 : index
    %c0_24 = arith.constant 0 : index
    %47 = vector.load %arg3[%c0_23, %c0_24] : memref<32x128xf32, #tpu.memory_space<vmem>>, vector<32x128xf32>
    %cst_25 = arith.constant dense<0.000000e+00> : vector<8x128xf32>
    %48 = tpu.matmul %46, %47, %cst_25 {dimension_numbers = #tpu.dot_dimension_numbers<[1], [0], [0], [1], [0, 0, 1, 1], [], []>} : vector<8x32xf32>, vector<32x128xf32>, vector<8x128xf32> -> vector<8x128xf32>
    %c0_26 = arith.constant 0 : index
    %c0_27 = arith.constant 0 : index
    %49 = vector.load %arg9[%c0_26, %c0_27] : memref<8x32xf32, #tpu.memory_space<vmem>>, vector<8x32xf32>
    %c0_28 = arith.constant 0 : index
    %c0_29 = arith.constant 0 : index
    %50 = vector.load %arg4[%c0_28, %c0_29] : memref<32x128xf32, #tpu.memory_space<vmem>>, vector<32x128xf32>
    %cst_30 = arith.constant dense<0.000000e+00> : vector<8x128xf32>
    %51 = tpu.matmul %49, %50, %cst_30 {dimension_numbers = #tpu.dot_dimension_numbers<[1], [0], [0], [1], [0, 0, 1, 1], [], []>} : vector<8x32xf32>, vector<32x128xf32>, vector<8x128xf32> -> vector<8x128xf32>
    %52 = arith.addf %48, %51 : vector<8x128xf32>
    %53 = arith.addf %52, %5 : vector<8x128xf32>
    %54 = vector.extract_strided_slice %53 {offsets = [0, 0], sizes = [8, 32], strides = [1, 1]} : vector<8x128xf32> to vector<8x32xf32>
    %55 = arith.negf %54 : vector<8x32xf32>
    %56 = math.exp %55 : vector<8x32xf32>
    %cst_31 = arith.constant 1.000000e+00 : f32
    %57 = vector.broadcast %cst_31 : f32 to vector<8x32xf32>
    %58 = arith.addf %57, %56 : vector<8x32xf32>
    %59 = arith.divf %57, %58 : vector<8x32xf32>
    %60 = vector.extract_strided_slice %53 {offsets = [0, 32], sizes = [8, 32], strides = [1, 1]} : vector<8x128xf32> to vector<8x32xf32>
    %61 = arith.negf %60 : vector<8x32xf32>
    %62 = math.exp %61 : vector<8x32xf32>
    %cst_32 = arith.constant 1.000000e+00 : f32
    %63 = vector.broadcast %cst_32 : f32 to vector<8x32xf32>
    %64 = arith.addf %63, %62 : vector<8x32xf32>
    %65 = arith.divf %63, %64 : vector<8x32xf32>
    %66 = vector.extract_strided_slice %53 {offsets = [0, 64], sizes = [8, 32], strides = [1, 1]} : vector<8x128xf32> to vector<8x32xf32>
    %67 = math.tanh %66 : vector<8x32xf32>
    %68 = vector.extract_strided_slice %53 {offsets = [0, 96], sizes = [8, 32], strides = [1, 1]} : vector<8x128xf32> to vector<8x32xf32>
    %69 = arith.negf %68 : vector<8x32xf32>
    %70 = math.exp %69 : vector<8x32xf32>
    %cst_33 = arith.constant 1.000000e+00 : f32
    %71 = vector.broadcast %cst_33 : f32 to vector<8x32xf32>
    %72 = arith.addf %71, %70 : vector<8x32xf32>
    %73 = arith.divf %71, %72 : vector<8x32xf32>
    %c0_34 = arith.constant 0 : index
    %c0_35 = arith.constant 0 : index
    %74 = vector.load %arg10[%c0_34, %c0_35] : memref<8x32xf32, #tpu.memory_space<vmem>>, vector<8x32xf32>
    %75 = arith.mulf %65, %74 : vector<8x32xf32>
    %76 = arith.mulf %59, %67 : vector<8x32xf32>
    %77 = arith.addf %75, %76 : vector<8x32xf32>
    %78 = math.tanh %77 : vector<8x32xf32>
    %79 = arith.mulf %73, %78 : vector<8x32xf32>
    %c0_36 = arith.constant 0 : index
    %c0_37 = arith.constant 0 : index
    %80 = vector.load %arg9[%c0_36, %c0_37] : memref<8x32xf32, #tpu.memory_space<vmem>>, vector<8x32xf32>
    tpu.vector_store %arg9[%c0_36, %c0_37], %79 {strides = array<i32>} : memref<8x32xf32, #tpu.memory_space<vmem>>, vector<8x32xf32>,
    %c0_38 = arith.constant 0 : index
    %c0_39 = arith.constant 0 : index
    %81 = vector.load %arg10[%c0_38, %c0_39] : memref<8x32xf32, #tpu.memory_space<vmem>>, vector<8x32xf32>
    tpu.vector_store %arg10[%c0_38, %c0_39], %77 {strides = array<i32>} : memref<8x32xf32, #tpu.memory_space<vmem>>, vector<8x32xf32>,
    %c2_i32 = arith.constant 2 : i32
    %82 = arith.index_cast %c2_i32 : i32 to index
    %c0_40 = arith.constant 0 : index
    %c0_41 = arith.constant 0 : index
    %83 = vector.load %arg2[%82, %c0_40, %c0_41] : memref<8x8x32xf32, #tpu.memory_space<vmem>>, vector<1x8x32xf32>
    %84 = vector.shape_cast %83 : vector<1x8x32xf32> to vector<8x32xf32>
    %c0_42 = arith.constant 0 : index
    %c0_43 = arith.constant 0 : index
    %85 = vector.load %arg3[%c0_42, %c0_43] : memref<32x128xf32, #tpu.memory_space<vmem>>, vector<32x128xf32>
    %cst_44 = arith.constant dense<0.000000e+00> : vector<8x128xf32>
    %86 = tpu.matmul %84, %85, %cst_44 {dimension_numbers = #tpu.dot_dimension_numbers<[1], [0], [0], [1], [0, 0, 1, 1], [], []>} : vector<8x32xf32>, vector<32x128xf32>, vector<8x128xf32> -> vector<8x128xf32>
    %c0_45 = arith.constant 0 : index
    %c0_46 = arith.constant 0 : index
    %87 = vector.load %arg9[%c0_45, %c0_46] : memref<8x32xf32, #tpu.memory_space<vmem>>, vector<8x32xf32>
    %c0_47 = arith.constant 0 : index
    %c0_48 = arith.constant 0 : index
    %88 = vector.load %arg4[%c0_47, %c0_48] : memref<32x128xf32, #tpu.memory_space<vmem>>, vector<32x128xf32>
    %cst_49 = arith.constant dense<0.000000e+00> : vector<8x128xf32>
    %89 = tpu.matmul %87, %88, %cst_49 {dimension_numbers = #tpu.dot_dimension_numbers<[1], [0], [0], [1], [0, 0, 1, 1], [], []>} : vector<8x32xf32>, vector<32x128xf32>, vector<8x128xf32> -> vector<8x128xf32>
    %90 = arith.addf %86, %89 : vector<8x128xf32>
    %91 = arith.addf %90, %5 : vector<8x128xf32>
    %92 = vector.extract_strided_slice %91 {offsets = [0, 0], sizes = [8, 32], strides = [1, 1]} : vector<8x128xf32> to vector<8x32xf32>
    %93 = arith.negf %92 : vector<8x32xf32>
    %94 = math.exp %93 : vector<8x32xf32>
    %cst_50 = arith.constant 1.000000e+00 : f32
    %95 = vector.broadcast %cst_50 : f32 to vector<8x32xf32>
    %96 = arith.addf %95, %94 : vector<8x32xf32>
    %97 = arith.divf %95, %96 : vector<8x32xf32>
    %98 = vector.extract_strided_slice %91 {offsets = [0, 32], sizes = [8, 32], strides = [1, 1]} : vector<8x128xf32> to vector<8x32xf32>
    %99 = arith.negf %98 : vector<8x32xf32>
    %100 = math.exp %99 : vector<8x32xf32>
    %cst_51 = arith.constant 1.000000e+00 : f32
    %101 = vector.broadcast %cst_51 : f32 to vector<8x32xf32>
    %102 = arith.addf %101, %100 : vector<8x32xf32>
    %103 = arith.divf %101, %102 : vector<8x32xf32>
    %104 = vector.extract_strided_slice %91 {offsets = [0, 64], sizes = [8, 32], strides = [1, 1]} : vector<8x128xf32> to vector<8x32xf32>
    %105 = math.tanh %104 : vector<8x32xf32>
    %106 = vector.extract_strided_slice %91 {offsets = [0, 96], sizes = [8, 32], strides = [1, 1]} : vector<8x128xf32> to vector<8x32xf32>
    %107 = arith.negf %106 : vector<8x32xf32>
    %108 = math.exp %107 : vector<8x32xf32>
    %cst_52 = arith.constant 1.000000e+00 : f32
    %109 = vector.broadcast %cst_52 : f32 to vector<8x32xf32>
    %110 = arith.addf %109, %108 : vector<8x32xf32>
    %111 = arith.divf %109, %110 : vector<8x32xf32>
    %c0_53 = arith.constant 0 : index
    %c0_54 = arith.constant 0 : index
    %112 = vector.load %arg10[%c0_53, %c0_54] : memref<8x32xf32, #tpu.memory_space<vmem>>, vector<8x32xf32>
    %113 = arith.mulf %103, %112 : vector<8x32xf32>
    %114 = arith.mulf %97, %105 : vector<8x32xf32>
    %115 = arith.addf %113, %114 : vector<8x32xf32>
    %116 = math.tanh %115 : vector<8x32xf32>
    %117 = arith.mulf %111, %116 : vector<8x32xf32>
    %c0_55 = arith.constant 0 : index
    %c0_56 = arith.constant 0 : index
    %118 = vector.load %arg9[%c0_55, %c0_56] : memref<8x32xf32, #tpu.memory_space<vmem>>, vector<8x32xf32>
    tpu.vector_store %arg9[%c0_55, %c0_56], %117 {strides = array<i32>} : memref<8x32xf32, #tpu.memory_space<vmem>>, vector<8x32xf32>,
    %c0_57 = arith.constant 0 : index
    %c0_58 = arith.constant 0 : index
    %119 = vector.load %arg10[%c0_57, %c0_58] : memref<8x32xf32, #tpu.memory_space<vmem>>, vector<8x32xf32>
    tpu.vector_store %arg10[%c0_57, %c0_58], %115 {strides = array<i32>} : memref<8x32xf32, #tpu.memory_space<vmem>>, vector<8x32xf32>,
    %c3_i32 = arith.constant 3 : i32
    %120 = arith.index_cast %c3_i32 : i32 to index
    %c0_59 = arith.constant 0 : index
    %c0_60 = arith.constant 0 : index
    %121 = vector.load %arg2[%120, %c0_59, %c0_60] : memref<8x8x32xf32, #tpu.memory_space<vmem>>, vector<1x8x32xf32>
    %122 = vector.shape_cast %121 : vector<1x8x32xf32> to vector<8x32xf32>
    %c0_61 = arith.constant 0 : index
    %c0_62 = arith.constant 0 : index
    %123 = vector.load %arg3[%c0_61, %c0_62] : memref<32x128xf32, #tpu.memory_space<vmem>>, vector<32x128xf32>
    %cst_63 = arith.constant dense<0.000000e+00> : vector<8x128xf32>
    %124 = tpu.matmul %122, %123, %cst_63 {dimension_numbers = #tpu.dot_dimension_numbers<[1], [0], [0], [1], [0, 0, 1, 1], [], []>} : vector<8x32xf32>, vector<32x128xf32>, vector<8x128xf32> -> vector<8x128xf32>
    %c0_64 = arith.constant 0 : index
    %c0_65 = arith.constant 0 : index
    %125 = vector.load %arg9[%c0_64, %c0_65] : memref<8x32xf32, #tpu.memory_space<vmem>>, vector<8x32xf32>
    %c0_66 = arith.constant 0 : index
    %c0_67 = arith.constant 0 : index
    %126 = vector.load %arg4[%c0_66, %c0_67] : memref<32x128xf32, #tpu.memory_space<vmem>>, vector<32x128xf32>
    %cst_68 = arith.constant dense<0.000000e+00> : vector<8x128xf32>
    %127 = tpu.matmul %125, %126, %cst_68 {dimension_numbers = #tpu.dot_dimension_numbers<[1], [0], [0], [1], [0, 0, 1, 1], [], []>} : vector<8x32xf32>, vector<32x128xf32>, vector<8x128xf32> -> vector<8x128xf32>
    %128 = arith.addf %124, %127 : vector<8x128xf32>
    %129 = arith.addf %128, %5 : vector<8x128xf32>
    %130 = vector.extract_strided_slice %129 {offsets = [0, 0], sizes = [8, 32], strides = [1, 1]} : vector<8x128xf32> to vector<8x32xf32>
    %131 = arith.negf %130 : vector<8x32xf32>
    %132 = math.exp %131 : vector<8x32xf32>
    %cst_69 = arith.constant 1.000000e+00 : f32
    %133 = vector.broadcast %cst_69 : f32 to vector<8x32xf32>
    %134 = arith.addf %133, %132 : vector<8x32xf32>
    %135 = arith.divf %133, %134 : vector<8x32xf32>
    %136 = vector.extract_strided_slice %129 {offsets = [0, 32], sizes = [8, 32], strides = [1, 1]} : vector<8x128xf32> to vector<8x32xf32>
    %137 = arith.negf %136 : vector<8x32xf32>
    %138 = math.exp %137 : vector<8x32xf32>
    %cst_70 = arith.constant 1.000000e+00 : f32
    %139 = vector.broadcast %cst_70 : f32 to vector<8x32xf32>
    %140 = arith.addf %139, %138 : vector<8x32xf32>
    %141 = arith.divf %139, %140 : vector<8x32xf32>
    %142 = vector.extract_strided_slice %129 {offsets = [0, 64], sizes = [8, 32], strides = [1, 1]} : vector<8x128xf32> to vector<8x32xf32>
    %143 = math.tanh %142 : vector<8x32xf32>
    %144 = vector.extract_strided_slice %129 {offsets = [0, 96], sizes = [8, 32], strides = [1, 1]} : vector<8x128xf32> to vector<8x32xf32>
    %145 = arith.negf %144 : vector<8x32xf32>
    %146 = math.exp %145 : vector<8x32xf32>
    %cst_71 = arith.constant 1.000000e+00 : f32
    %147 = vector.broadcast %cst_71 : f32 to vector<8x32xf32>
    %148 = arith.addf %147, %146 : vector<8x32xf32>
    %149 = arith.divf %147, %148 : vector<8x32xf32>
    %c0_72 = arith.constant 0 : index
    %c0_73 = arith.constant 0 : index
    %150 = vector.load %arg10[%c0_72, %c0_73] : memref<8x32xf32, #tpu.memory_space<vmem>>, vector<8x32xf32>
    %151 = arith.mulf %141, %150 : vector<8x32xf32>
    %152 = arith.mulf %135, %143 : vector<8x32xf32>
    %153 = arith.addf %151, %152 : vector<8x32xf32>
    %154 = math.tanh %153 : vector<8x32xf32>
    %155 = arith.mulf %149, %154 : vector<8x32xf32>
    %c0_74 = arith.constant 0 : index
    %c0_75 = arith.constant 0 : index
    %156 = vector.load %arg9[%c0_74, %c0_75] : memref<8x32xf32, #tpu.memory_space<vmem>>, vector<8x32xf32>
    tpu.vector_store %arg9[%c0_74, %c0_75], %155 {strides = array<i32>} : memref<8x32xf32, #tpu.memory_space<vmem>>, vector<8x32xf32>,
    %c0_76 = arith.constant 0 : index
    %c0_77 = arith.constant 0 : index
    %157 = vector.load %arg10[%c0_76, %c0_77] : memref<8x32xf32, #tpu.memory_space<vmem>>, vector<8x32xf32>
    tpu.vector_store %arg10[%c0_76, %c0_77], %153 {strides = array<i32>} : memref<8x32xf32, #tpu.memory_space<vmem>>, vector<8x32xf32>,
    %c4_i32 = arith.constant 4 : i32
    %158 = arith.index_cast %c4_i32 : i32 to index
    %c0_78 = arith.constant 0 : index
    %c0_79 = arith.constant 0 : index
    %159 = vector.load %arg2[%158, %c0_78, %c0_79] : memref<8x8x32xf32, #tpu.memory_space<vmem>>, vector<1x8x32xf32>
    %160 = vector.shape_cast %159 : vector<1x8x32xf32> to vector<8x32xf32>
    %c0_80 = arith.constant 0 : index
    %c0_81 = arith.constant 0 : index
    %161 = vector.load %arg3[%c0_80, %c0_81] : memref<32x128xf32, #tpu.memory_space<vmem>>, vector<32x128xf32>
    %cst_82 = arith.constant dense<0.000000e+00> : vector<8x128xf32>
    %162 = tpu.matmul %160, %161, %cst_82 {dimension_numbers = #tpu.dot_dimension_numbers<[1], [0], [0], [1], [0, 0, 1, 1], [], []>} : vector<8x32xf32>, vector<32x128xf32>, vector<8x128xf32> -> vector<8x128xf32>
    %c0_83 = arith.constant 0 : index
    %c0_84 = arith.constant 0 : index
    %163 = vector.load %arg9[%c0_83, %c0_84] : memref<8x32xf32, #tpu.memory_space<vmem>>, vector<8x32xf32>
    %c0_85 = arith.constant 0 : index
    %c0_86 = arith.constant 0 : index
    %164 = vector.load %arg4[%c0_85, %c0_86] : memref<32x128xf32, #tpu.memory_space<vmem>>, vector<32x128xf32>
    %cst_87 = arith.constant dense<0.000000e+00> : vector<8x128xf32>
    %165 = tpu.matmul %163, %164, %cst_87 {dimension_numbers = #tpu.dot_dimension_numbers<[1], [0], [0], [1], [0, 0, 1, 1], [], []>} : vector<8x32xf32>, vector<32x128xf32>, vector<8x128xf32> -> vector<8x128xf32>
    %166 = arith.addf %162, %165 : vector<8x128xf32>
    %167 = arith.addf %166, %5 : vector<8x128xf32>
    %168 = vector.extract_strided_slice %167 {offsets = [0, 0], sizes = [8, 32], strides = [1, 1]} : vector<8x128xf32> to vector<8x32xf32>
    %169 = arith.negf %168 : vector<8x32xf32>
    %170 = math.exp %169 : vector<8x32xf32>
    %cst_88 = arith.constant 1.000000e+00 : f32
    %171 = vector.broadcast %cst_88 : f32 to vector<8x32xf32>
    %172 = arith.addf %171, %170 : vector<8x32xf32>
    %173 = arith.divf %171, %172 : vector<8x32xf32>
    %174 = vector.extract_strided_slice %167 {offsets = [0, 32], sizes = [8, 32], strides = [1, 1]} : vector<8x128xf32> to vector<8x32xf32>
    %175 = arith.negf %174 : vector<8x32xf32>
    %176 = math.exp %175 : vector<8x32xf32>
    %cst_89 = arith.constant 1.000000e+00 : f32
    %177 = vector.broadcast %cst_89 : f32 to vector<8x32xf32>
    %178 = arith.addf %177, %176 : vector<8x32xf32>
    %179 = arith.divf %177, %178 : vector<8x32xf32>
    %180 = vector.extract_strided_slice %167 {offsets = [0, 64], sizes = [8, 32], strides = [1, 1]} : vector<8x128xf32> to vector<8x32xf32>
    %181 = math.tanh %180 : vector<8x32xf32>
    %182 = vector.extract_strided_slice %167 {offsets = [0, 96], sizes = [8, 32], strides = [1, 1]} : vector<8x128xf32> to vector<8x32xf32>
    %183 = arith.negf %182 : vector<8x32xf32>
    %184 = math.exp %183 : vector<8x32xf32>
    %cst_90 = arith.constant 1.000000e+00 : f32
    %185 = vector.broadcast %cst_90 : f32 to vector<8x32xf32>
    %186 = arith.addf %185, %184 : vector<8x32xf32>
    %187 = arith.divf %185, %186 : vector<8x32xf32>
    %c0_91 = arith.constant 0 : index
    %c0_92 = arith.constant 0 : index
    %188 = vector.load %arg10[%c0_91, %c0_92] : memref<8x32xf32, #tpu.memory_space<vmem>>, vector<8x32xf32>
    %189 = arith.mulf %179, %188 : vector<8x32xf32>
    %190 = arith.mulf %173, %181 : vector<8x32xf32>
    %191 = arith.addf %189, %190 : vector<8x32xf32>
    %192 = math.tanh %191 : vector<8x32xf32>
    %193 = arith.mulf %187, %192 : vector<8x32xf32>
    %c0_93 = arith.constant 0 : index
    %c0_94 = arith.constant 0 : index
    %194 = vector.load %arg9[%c0_93, %c0_94] : memref<8x32xf32, #tpu.memory_space<vmem>>, vector<8x32xf32>
    tpu.vector_store %arg9[%c0_93, %c0_94], %193 {strides = array<i32>} : memref<8x32xf32, #tpu.memory_space<vmem>>, vector<8x32xf32>,
    %c0_95 = arith.constant 0 : index
    %c0_96 = arith.constant 0 : index
    %195 = vector.load %arg10[%c0_95, %c0_96] : memref<8x32xf32, #tpu.memory_space<vmem>>, vector<8x32xf32>
    tpu.vector_store %arg10[%c0_95, %c0_96], %191 {strides = array<i32>} : memref<8x32xf32, #tpu.memory_space<vmem>>, vector<8x32xf32>,
    %c5_i32 = arith.constant 5 : i32
    %196 = arith.index_cast %c5_i32 : i32 to index
    %c0_97 = arith.constant 0 : index
    %c0_98 = arith.constant 0 : index
    %197 = vector.load %arg2[%196, %c0_97, %c0_98] : memref<8x8x32xf32, #tpu.memory_space<vmem>>, vector<1x8x32xf32>
    %198 = vector.shape_cast %197 : vector<1x8x32xf32> to vector<8x32xf32>
    %c0_99 = arith.constant 0 : index
    %c0_100 = arith.constant 0 : index
    %199 = vector.load %arg3[%c0_99, %c0_100] : memref<32x128xf32, #tpu.memory_space<vmem>>, vector<32x128xf32>
    %cst_101 = arith.constant dense<0.000000e+00> : vector<8x128xf32>
    %200 = tpu.matmul %198, %199, %cst_101 {dimension_numbers = #tpu.dot_dimension_numbers<[1], [0], [0], [1], [0, 0, 1, 1], [], []>} : vector<8x32xf32>, vector<32x128xf32>, vector<8x128xf32> -> vector<8x128xf32>
    %c0_102 = arith.constant 0 : index
    %c0_103 = arith.constant 0 : index
    %201 = vector.load %arg9[%c0_102, %c0_103] : memref<8x32xf32, #tpu.memory_space<vmem>>, vector<8x32xf32>
    %c0_104 = arith.constant 0 : index
    %c0_105 = arith.constant 0 : index
    %202 = vector.load %arg4[%c0_104, %c0_105] : memref<32x128xf32, #tpu.memory_space<vmem>>, vector<32x128xf32>
    %cst_106 = arith.constant dense<0.000000e+00> : vector<8x128xf32>
    %203 = tpu.matmul %201, %202, %cst_106 {dimension_numbers = #tpu.dot_dimension_numbers<[1], [0], [0], [1], [0, 0, 1, 1], [], []>} : vector<8x32xf32>, vector<32x128xf32>, vector<8x128xf32> -> vector<8x128xf32>
    %204 = arith.addf %200, %203 : vector<8x128xf32>
    %205 = arith.addf %204, %5 : vector<8x128xf32>
    %206 = vector.extract_strided_slice %205 {offsets = [0, 0], sizes = [8, 32], strides = [1, 1]} : vector<8x128xf32> to vector<8x32xf32>
    %207 = arith.negf %206 : vector<8x32xf32>
    %208 = math.exp %207 : vector<8x32xf32>
    %cst_107 = arith.constant 1.000000e+00 : f32
    %209 = vector.broadcast %cst_107 : f32 to vector<8x32xf32>
    %210 = arith.addf %209, %208 : vector<8x32xf32>
    %211 = arith.divf %209, %210 : vector<8x32xf32>
    %212 = vector.extract_strided_slice %205 {offsets = [0, 32], sizes = [8, 32], strides = [1, 1]} : vector<8x128xf32> to vector<8x32xf32>
    %213 = arith.negf %212 : vector<8x32xf32>
    %214 = math.exp %213 : vector<8x32xf32>
    %cst_108 = arith.constant 1.000000e+00 : f32
    %215 = vector.broadcast %cst_108 : f32 to vector<8x32xf32>
    %216 = arith.addf %215, %214 : vector<8x32xf32>
    %217 = arith.divf %215, %216 : vector<8x32xf32>
    %218 = vector.extract_strided_slice %205 {offsets = [0, 64], sizes = [8, 32], strides = [1, 1]} : vector<8x128xf32> to vector<8x32xf32>
    %219 = math.tanh %218 : vector<8x32xf32>
    %220 = vector.extract_strided_slice %205 {offsets = [0, 96], sizes = [8, 32], strides = [1, 1]} : vector<8x128xf32> to vector<8x32xf32>
    %221 = arith.negf %220 : vector<8x32xf32>
    %222 = math.exp %221 : vector<8x32xf32>
    %cst_109 = arith.constant 1.000000e+00 : f32
    %223 = vector.broadcast %cst_109 : f32 to vector<8x32xf32>
    %224 = arith.addf %223, %222 : vector<8x32xf32>
    %225 = arith.divf %223, %224 : vector<8x32xf32>
    %c0_110 = arith.constant 0 : index
    %c0_111 = arith.constant 0 : index
    %226 = vector.load %arg10[%c0_110, %c0_111] : memref<8x32xf32, #tpu.memory_space<vmem>>, vector<8x32xf32>
    %227 = arith.mulf %217, %226 : vector<8x32xf32>
    %228 = arith.mulf %211, %219 : vector<8x32xf32>
    %229 = arith.addf %227, %228 : vector<8x32xf32>
    %230 = math.tanh %229 : vector<8x32xf32>
    %231 = arith.mulf %225, %230 : vector<8x32xf32>
    %c0_112 = arith.constant 0 : index
    %c0_113 = arith.constant 0 : index
    %232 = vector.load %arg9[%c0_112, %c0_113] : memref<8x32xf32, #tpu.memory_space<vmem>>, vector<8x32xf32>
    tpu.vector_store %arg9[%c0_112, %c0_113], %231 {strides = array<i32>} : memref<8x32xf32, #tpu.memory_space<vmem>>, vector<8x32xf32>,
    %c0_114 = arith.constant 0 : index
    %c0_115 = arith.constant 0 : index
    %233 = vector.load %arg10[%c0_114, %c0_115] : memref<8x32xf32, #tpu.memory_space<vmem>>, vector<8x32xf32>
    tpu.vector_store %arg10[%c0_114, %c0_115], %229 {strides = array<i32>} : memref<8x32xf32, #tpu.memory_space<vmem>>, vector<8x32xf32>,
    %c6_i32 = arith.constant 6 : i32
    %234 = arith.index_cast %c6_i32 : i32 to index
    %c0_116 = arith.constant 0 : index
    %c0_117 = arith.constant 0 : index
    %235 = vector.load %arg2[%234, %c0_116, %c0_117] : memref<8x8x32xf32, #tpu.memory_space<vmem>>, vector<1x8x32xf32>
    %236 = vector.shape_cast %235 : vector<1x8x32xf32> to vector<8x32xf32>
    %c0_118 = arith.constant 0 : index
    %c0_119 = arith.constant 0 : index
    %237 = vector.load %arg3[%c0_118, %c0_119] : memref<32x128xf32, #tpu.memory_space<vmem>>, vector<32x128xf32>
    %cst_120 = arith.constant dense<0.000000e+00> : vector<8x128xf32>
    %238 = tpu.matmul %236, %237, %cst_120 {dimension_numbers = #tpu.dot_dimension_numbers<[1], [0], [0], [1], [0, 0, 1, 1], [], []>} : vector<8x32xf32>, vector<32x128xf32>, vector<8x128xf32> -> vector<8x128xf32>
    %c0_121 = arith.constant 0 : index
    %c0_122 = arith.constant 0 : index
    %239 = vector.load %arg9[%c0_121, %c0_122] : memref<8x32xf32, #tpu.memory_space<vmem>>, vector<8x32xf32>
    %c0_123 = arith.constant 0 : index
    %c0_124 = arith.constant 0 : index
    %240 = vector.load %arg4[%c0_123, %c0_124] : memref<32x128xf32, #tpu.memory_space<vmem>>, vector<32x128xf32>
    %cst_125 = arith.constant dense<0.000000e+00> : vector<8x128xf32>
    %241 = tpu.matmul %239, %240, %cst_125 {dimension_numbers = #tpu.dot_dimension_numbers<[1], [0], [0], [1], [0, 0, 1, 1], [], []>} : vector<8x32xf32>, vector<32x128xf32>, vector<8x128xf32> -> vector<8x128xf32>
    %242 = arith.addf %238, %241 : vector<8x128xf32>
    %243 = arith.addf %242, %5 : vector<8x128xf32>
    %244 = vector.extract_strided_slice %243 {offsets = [0, 0], sizes = [8, 32], strides = [1, 1]} : vector<8x128xf32> to vector<8x32xf32>
    %245 = arith.negf %244 : vector<8x32xf32>
    %246 = math.exp %245 : vector<8x32xf32>
    %cst_126 = arith.constant 1.000000e+00 : f32
    %247 = vector.broadcast %cst_126 : f32 to vector<8x32xf32>
    %248 = arith.addf %247, %246 : vector<8x32xf32>
    %249 = arith.divf %247, %248 : vector<8x32xf32>
    %250 = vector.extract_strided_slice %243 {offsets = [0, 32], sizes = [8, 32], strides = [1, 1]} : vector<8x128xf32> to vector<8x32xf32>
    %251 = arith.negf %250 : vector<8x32xf32>
    %252 = math.exp %251 : vector<8x32xf32>
    %cst_127 = arith.constant 1.000000e+00 : f32
    %253 = vector.broadcast %cst_127 : f32 to vector<8x32xf32>
    %254 = arith.addf %253, %252 : vector<8x32xf32>
    %255 = arith.divf %253, %254 : vector<8x32xf32>
    %256 = vector.extract_strided_slice %243 {offsets = [0, 64], sizes = [8, 32], strides = [1, 1]} : vector<8x128xf32> to vector<8x32xf32>
    %257 = math.tanh %256 : vector<8x32xf32>
    %258 = vector.extract_strided_slice %243 {offsets = [0, 96], sizes = [8, 32], strides = [1, 1]} : vector<8x128xf32> to vector<8x32xf32>
    %259 = arith.negf %258 : vector<8x32xf32>
    %260 = math.exp %259 : vector<8x32xf32>
    %cst_128 = arith.constant 1.000000e+00 : f32
    %261 = vector.broadcast %cst_128 : f32 to vector<8x32xf32>
    %262 = arith.addf %261, %260 : vector<8x32xf32>
    %263 = arith.divf %261, %262 : vector<8x32xf32>
    %c0_129 = arith.constant 0 : index
    %c0_130 = arith.constant 0 : index
    %264 = vector.load %arg10[%c0_129, %c0_130] : memref<8x32xf32, #tpu.memory_space<vmem>>, vector<8x32xf32>
    %265 = arith.mulf %255, %264 : vector<8x32xf32>
    %266 = arith.mulf %249, %257 : vector<8x32xf32>
    %267 = arith.addf %265, %266 : vector<8x32xf32>
    %268 = math.tanh %267 : vector<8x32xf32>
    %269 = arith.mulf %263, %268 : vector<8x32xf32>
    %c0_131 = arith.constant 0 : index
    %c0_132 = arith.constant 0 : index
    %270 = vector.load %arg9[%c0_131, %c0_132] : memref<8x32xf32, #tpu.memory_space<vmem>>, vector<8x32xf32>
    tpu.vector_store %arg9[%c0_131, %c0_132], %269 {strides = array<i32>} : memref<8x32xf32, #tpu.memory_space<vmem>>, vector<8x32xf32>,
    %c0_133 = arith.constant 0 : index
    %c0_134 = arith.constant 0 : index
    %271 = vector.load %arg10[%c0_133, %c0_134] : memref<8x32xf32, #tpu.memory_space<vmem>>, vector<8x32xf32>
    tpu.vector_store %arg10[%c0_133, %c0_134], %267 {strides = array<i32>} : memref<8x32xf32, #tpu.memory_space<vmem>>, vector<8x32xf32>,
    %c7_i32 = arith.constant 7 : i32
    %272 = arith.index_cast %c7_i32 : i32 to index
    %c0_135 = arith.constant 0 : index
    %c0_136 = arith.constant 0 : index
    %273 = vector.load %arg2[%272, %c0_135, %c0_136] : memref<8x8x32xf32, #tpu.memory_space<vmem>>, vector<1x8x32xf32>
    %274 = vector.shape_cast %273 : vector<1x8x32xf32> to vector<8x32xf32>
    %c0_137 = arith.constant 0 : index
    %c0_138 = arith.constant 0 : index
    %275 = vector.load %arg3[%c0_137, %c0_138] : memref<32x128xf32, #tpu.memory_space<vmem>>, vector<32x128xf32>
    %cst_139 = arith.constant dense<0.000000e+00> : vector<8x128xf32>
    %276 = tpu.matmul %274, %275, %cst_139 {dimension_numbers = #tpu.dot_dimension_numbers<[1], [0], [0], [1], [0, 0, 1, 1], [], []>} : vector<8x32xf32>, vector<32x128xf32>, vector<8x128xf32> -> vector<8x128xf32>
    %c0_140 = arith.constant 0 : index
    %c0_141 = arith.constant 0 : index
    %277 = vector.load %arg9[%c0_140, %c0_141] : memref<8x32xf32, #tpu.memory_space<vmem>>, vector<8x32xf32>
    %c0_142 = arith.constant 0 : index
    %c0_143 = arith.constant 0 : index
    %278 = vector.load %arg4[%c0_142, %c0_143] : memref<32x128xf32, #tpu.memory_space<vmem>>, vector<32x128xf32>
    %cst_144 = arith.constant dense<0.000000e+00> : vector<8x128xf32>
    %279 = tpu.matmul %277, %278, %cst_144 {dimension_numbers = #tpu.dot_dimension_numbers<[1], [0], [0], [1], [0, 0, 1, 1], [], []>} : vector<8x32xf32>, vector<32x128xf32>, vector<8x128xf32> -> vector<8x128xf32>
    %280 = arith.addf %276, %279 : vector<8x128xf32>
    %281 = arith.addf %280, %5 : vector<8x128xf32>
    %282 = vector.extract_strided_slice %281 {offsets = [0, 0], sizes = [8, 32], strides = [1, 1]} : vector<8x128xf32> to vector<8x32xf32>
    %283 = arith.negf %282 : vector<8x32xf32>
    %284 = math.exp %283 : vector<8x32xf32>
    %cst_145 = arith.constant 1.000000e+00 : f32
    %285 = vector.broadcast %cst_145 : f32 to vector<8x32xf32>
    %286 = arith.addf %285, %284 : vector<8x32xf32>
    %287 = arith.divf %285, %286 : vector<8x32xf32>
    %288 = vector.extract_strided_slice %281 {offsets = [0, 32], sizes = [8, 32], strides = [1, 1]} : vector<8x128xf32> to vector<8x32xf32>
    %289 = arith.negf %288 : vector<8x32xf32>
    %290 = math.exp %289 : vector<8x32xf32>
    %cst_146 = arith.constant 1.000000e+00 : f32
    %291 = vector.broadcast %cst_146 : f32 to vector<8x32xf32>
    %292 = arith.addf %291, %290 : vector<8x32xf32>
    %293 = arith.divf %291, %292 : vector<8x32xf32>
    %294 = vector.extract_strided_slice %281 {offsets = [0, 64], sizes = [8, 32], strides = [1, 1]} : vector<8x128xf32> to vector<8x32xf32>
    %295 = math.tanh %294 : vector<8x32xf32>
    %296 = vector.extract_strided_slice %281 {offsets = [0, 96], sizes = [8, 32], strides = [1, 1]} : vector<8x128xf32> to vector<8x32xf32>
    %297 = arith.negf %296 : vector<8x32xf32>
    %298 = math.exp %297 : vector<8x32xf32>
    %cst_147 = arith.constant 1.000000e+00 : f32
    %299 = vector.broadcast %cst_147 : f32 to vector<8x32xf32>
    %300 = arith.addf %299, %298 : vector<8x32xf32>
    %301 = arith.divf %299, %300 : vector<8x32xf32>
    %c0_148 = arith.constant 0 : index
    %c0_149 = arith.constant 0 : index
    %302 = vector.load %arg10[%c0_148, %c0_149] : memref<8x32xf32, #tpu.memory_space<vmem>>, vector<8x32xf32>
    %303 = arith.mulf %293, %302 : vector<8x32xf32>
    %304 = arith.mulf %287, %295 : vector<8x32xf32>
    %305 = arith.addf %303, %304 : vector<8x32xf32>
    %306 = math.tanh %305 : vector<8x32xf32>
    %307 = arith.mulf %301, %306 : vector<8x32xf32>
    %c0_150 = arith.constant 0 : index
    %c0_151 = arith.constant 0 : index
    %308 = vector.load %arg9[%c0_150, %c0_151] : memref<8x32xf32, #tpu.memory_space<vmem>>, vector<8x32xf32>
    tpu.vector_store %arg9[%c0_150, %c0_151], %307 {strides = array<i32>} : memref<8x32xf32, #tpu.memory_space<vmem>>, vector<8x32xf32>,
    %c0_152 = arith.constant 0 : index
    %c0_153 = arith.constant 0 : index
    %309 = vector.load %arg10[%c0_152, %c0_153] : memref<8x32xf32, #tpu.memory_space<vmem>>, vector<8x32xf32>
    tpu.vector_store %arg10[%c0_152, %c0_153], %305 {strides = array<i32>} : memref<8x32xf32, #tpu.memory_space<vmem>>, vector<8x32xf32>,
    %c8_i32 = arith.constant 8 : i32
    %c0_i32_154 = arith.constant 0 : i32
    %310 = arith.cmpi eq, %arg1, %c0_i32_154 : i32
    %311 = arith.extui %310 : i1 to i32
    %c0_i32_155 = arith.constant 0 : i32
    %312 = arith.cmpi ne, %311, %c0_i32_155 : i32
    scf.if %312 {
      %c0_156 = arith.constant 0 : index
      %c0_157 = arith.constant 0 : index
      %313 = vector.load %arg9[%c0_156, %c0_157] : memref<8x32xf32, #tpu.memory_space<vmem>>, vector<8x32xf32>
      %c0_158 = arith.constant 0 : index
      %c0_159 = arith.constant 0 : index
      %314 = vector.load %arg6[%c0_158, %c0_159] : memref<32x128xf32, #tpu.memory_space<vmem>>, vector<32x128xf32>
      %cst_160 = arith.constant dense<0.000000e+00> : vector<8x128xf32>
      %315 = tpu.matmul %313, %314, %cst_160 {dimension_numbers = #tpu.dot_dimension_numbers<[1], [0], [0], [1], [0, 0, 1, 1], [], []>} : vector<8x32xf32>, vector<32x128xf32>, vector<8x128xf32> -> vector<8x128xf32>
      %c0_161 = arith.constant 0 : index
      %c0_162 = arith.constant 0 : index
      %316 = vector.load %arg7[%c0_161, %c0_162] : memref<1x128xf32, #tpu.memory_space<vmem>>, vector<1x128xf32>
      %317 = vector.broadcast %316 : vector<1x128xf32> to vector<8x128xf32>
      %318 = arith.addf %315, %317 : vector<8x128xf32>
      %c0_163 = arith.constant 0 : index
      %c0_164 = arith.constant 0 : index
      %319 = vector.load %arg8[%c0_163, %c0_164] : memref<8x128xf32, #tpu.memory_space<vmem>>, vector<8x128xf32>
      tpu.vector_store %arg8[%c0_163, %c0_164], %318 {strides = array<i32>} : memref<8x128xf32, #tpu.memory_space<vmem>>, vector<8x128xf32>,
    } else {
    }
    return
  }
  func.func @transform_0(%arg0: i32, %arg1: i32) -> (i32, i32, i32) {
    %c0_i32 = arith.constant 0 : i32
    %c0_i32_0 = arith.constant 0 : i32
    return %arg1, %arg0, %c0_i32 : i32, i32, i32
  }
  func.func @transform_1(%arg0: i32, %arg1: i32) -> (i32, i32) {
    %c0_i32 = arith.constant 0 : i32
    %c0_i32_0 = arith.constant 0 : i32
    %c0_i32_1 = arith.constant 0 : i32
    return %c0_i32, %c0_i32_0 : i32, i32
  }
  func.func @transform_2(%arg0: i32, %arg1: i32) -> (i32, i32) {
    %c0_i32 = arith.constant 0 : i32
    %c0_i32_0 = arith.constant 0 : i32
    %c0_i32_1 = arith.constant 0 : i32
    return %c0_i32, %c0_i32_0 : i32, i32
  }
  func.func @transform_3(%arg0: i32, %arg1: i32) -> (i32, i32) {
    %c0_i32 = arith.constant 0 : i32
    %c0_i32_0 = arith.constant 0 : i32
    %c0_i32_1 = arith.constant 0 : i32
    return %c0_i32, %c0_i32_0 : i32, i32
  }
  func.func @transform_4(%arg0: i32, %arg1: i32) -> (i32, i32) {
    %c0_i32 = arith.constant 0 : i32
    %c0_i32_0 = arith.constant 0 : i32
    %c0_i32_1 = arith.constant 0 : i32
    return %c0_i32, %c0_i32_0 : i32, i32
  }
  func.func @transform_5(%arg0: i32, %arg1: i32) -> (i32, i32) {
    %c0_i32 = arith.constant 0 : i32
    %c0_i32_0 = arith.constant 0 : i32
    %c0_i32_1 = arith.constant 0 : i32
    return %c0_i32, %c0_i32_0 : i32, i32
  }
  func.func @transform_6(%arg0: i32, %arg1: i32) -> (i32, i32) {
    %c0_i32 = arith.constant 0 : i32
    %c0_i32_0 = arith.constant 0 : i32
    return %arg0, %c0_i32 : i32, i32
  }
}

</mosaic_0001>

<llo_original>
// kernel: tpu_custom_call.1
$region0: #{tpu_custom_call.1}
  #allocation0 [shape = 'u32[]', space=smem, size = 0x4, offset = 0x4, fixed_abs, tag = 'smem constant byte address 0x4 - core index']
  #allocation1 [shape = 'u32[144,128]{1,0:T(1,128)}', space=vmem, size = 0x12000, scoped, tag = 'internal scratch']
  #allocation2 [shape = 'f32[8,32]{1,0:T(8,128)}', space=vmem, size = 0x1000, scoped, tag = 'scratch operand']
  #allocation3 [shape = 'f32[8,32]{1,0:T(8,128)}', space=vmem, size = 0x1000, scoped, tag = 'scratch operand']
  %s0 = inlined_call_operand.hbm [shape: f32[8,8,32], index: 0, kind: input, shape index: {}]
  %s1 = inlined_call_operand.hbm [shape: f32[32,128], index: 1, kind: input, shape index: {}]
  %s2 = inlined_call_operand.hbm [shape: f32[32,128], index: 2, kind: input, shape index: {}]
  %s3 = inlined_call_operand.vmem [shape: f32[1,128], index: 3, kind: input, shape index: {}]
  %s4 = inlined_call_operand.hbm [shape: f32[32,128], index: 4, kind: input, shape index: {}]
  %s5 = inlined_call_operand.vmem [shape: f32[1,128], index: 5, kind: input, shape index: {}]
  %s6 = inlined_call_operand.hbm [shape: f32[8,128], index: 6, kind: output, shape index: {}]
  %s7 = sld [smem:[#allocation0]]
  $region58: #{tpu_custom_call.1} parent=0
    _
  %s9 = ssub.s32 1, %s7
  %s10 = scalar_select 0, %s9, %s7
  $region1: #{tpu_custom_call.1} parent=0
    #allocation4 [shape = 'u8[32768]{0}', space=vmem, size = 0x8000, scoped, tag = 'input window, operand 0, single buffered']
    #allocation5 [shape = 's32[1]{0}', space=sflag, size = 0x4, scoped, tag = 'scoped memory for tpu_custom_call.1']
    #allocation6 [shape = 's32[1]{0}', space=sflag, size = 0x4, scoped, tag = 'scoped memory for tpu_custom_call.1']
    #allocation7 [shape = 'u8[16384]{0}', space=vmem, size = 0x4000, scoped, tag = 'input window, operand 1, single buffered']
    #allocation8 [shape = 's32[1]{0}', space=sflag, size = 0x4, scoped, tag = 'scoped memory for tpu_custom_call.1']
    #allocation9 [shape = 'u8[16384]{0}', space=vmem, size = 0x4000, scoped, tag = 'input window, operand 2, single buffered']
    #allocation10 [shape = 'u8[16384]{0}', space=vmem, size = 0x4000, scoped, tag = 'input window, operand 4, single buffered']
    #allocation11 [shape = 's32[1]{0}', space=sflag, size = 0x4, scoped, tag = 'scoped memory for tpu_custom_call.1']
    #allocation12 [shape = 'u8[4096]{0}', space=vmem, size = 0x1000, scoped, tag = 'output window, operand 0, single buffered']
    %11 = vsyncpa [#allocation5], 0
    %12 = vsyncpa [#allocation8], 0
    %13 = vsyncpa [#allocation11], 0
    %14 = vsyncpa [#allocation6], 0
    // Predicated region
    $region2: #{tpu_custom_call.1} parent=1 // pred_check
      _
    $region3: #{tpu_custom_call.1} parent=1 // pred_check_branch
      %16 = sbr.rel (0) target = $region5
    $region4: #{tpu_custom_call.1} parent=1 // pred_region
      %s18 = ssub.s32 1024, 1024
      %19 = vsyncadd [#allocation5], %s18
      %s20 = sshll.u32 [#allocation4], 4
      %s21 = int_to_ptr.vmem [resolvable:$true] %s20
      %26 = dma.hbm_to_vmem [thread:$0]  %s0, 1024, %s21, [#allocation5], 128, 128, 8
    $region5: #{tpu_custom_call.1} parent=1 // pred_fallthru
      _
    // Predicated region
    $region6: #{tpu_custom_call.1} parent=1 // pred_check
      _
    $region7: #{tpu_custom_call.1} parent=1 // pred_check_branch
      %28 = sbr.rel (0) target = $region9
    $region8: #{tpu_custom_call.1} parent=1 // pred_region
      %s30 = ssub.s32 512, 512
      %31 = vsyncadd [#allocation8], %s30
      %s32 = sshll.u32 [#allocation7], 4
      %s33 = int_to_ptr.vmem [resolvable:$true] %s32
      %38 = dma.hbm_to_vmem [thread:$0]  %s1, 512, %s33, [#allocation8], 128, 128, 8
    $region9: #{tpu_custom_call.1} parent=1 // pred_fallthru
      _
    // Predicated region
    $region10: #{tpu_custom_call.1} parent=1 // pred_check
      _
    $region11: #{tpu_custom_call.1} parent=1 // pred_check_branch
      %40 = sbr.rel (0) target = $region13
    $region12: #{tpu_custom_call.1} parent=1 // pred_region
      %s42 = ssub.s32 512, 512
      %43 = vsyncadd [#allocation8], %s42
      %s44 = sshll.u32 [#allocation9], 4
      %s45 = int_to_ptr.vmem [resolvable:$true] %s44
      %50 = dma.hbm_to_vmem [thread:$0]  %s2, 512, %s45, [#allocation8], 128, 128, 8
    $region13: #{tpu_custom_call.1} parent=1 // pred_fallthru
      _
    // Predicated region
    $region14: #{tpu_custom_call.1} parent=1 // pred_check
      _
    $region15: #{tpu_custom_call.1} parent=1 // pred_check_branch
      %52 = sbr.rel (0) target = $region17
    $region16: #{tpu_custom_call.1} parent=1 // pred_region
      _
    $region17: #{tpu_custom_call.1} parent=1 // pred_fallthru
      _
    // Predicated region
    $region18: #{tpu_custom_call.1} parent=1 // pred_check
      _
    $region19: #{tpu_custom_call.1} parent=1 // pred_check_branch
      %54 = sbr.rel (0) target = $region21
    $region20: #{tpu_custom_call.1} parent=1 // pred_region
      %s56 = ssub.s32 512, 512
      %57 = vsyncadd [#allocation11], %s56
      %s58 = sshll.u32 [#allocation10], 4
      %s59 = int_to_ptr.vmem [resolvable:$true] %s58
      %64 = dma.hbm_to_vmem [thread:$0]  %s4, 512, %s59, [#allocation11], 128, 128, 8
    $region21: #{tpu_custom_call.1} parent=1 // pred_fallthru
      _
    // Predicated region
    $region22: #{tpu_custom_call.1} parent=1 // pred_check
      _
    $region23: #{tpu_custom_call.1} parent=1 // pred_check_branch
      %66 = sbr.rel (0) target = $region25
    $region24: #{tpu_custom_call.1} parent=1 // pred_region
      _
    $region25: #{tpu_custom_call.1} parent=1 // pred_fallthru
      _
    // Predicated region
    $region26: #{tpu_custom_call.1} parent=1 // pred_check
      _
    $region27: #{tpu_custom_call.1} parent=1 // pred_check_branch
      %68 = sbr.rel (0) target = $region29
    $region28: #{tpu_custom_call.1} parent=1 // pred_region
      %69 = dma.done [#allocation5], 1024
    $region29: #{tpu_custom_call.1} parent=1 // pred_fallthru
      _
    // Predicated region
    $region30: #{tpu_custom_call.1} parent=1 // pred_check
      _
    $region31: #{tpu_custom_call.1} parent=1 // pred_check_branch
      %71 = sbr.rel (0) target = $region33
    $region32: #{tpu_custom_call.1} parent=1 // pred_region
      %72 = dma.done [#allocation8], 512
    $region33: #{tpu_custom_call.1} parent=1 // pred_fallthru
      _
    // Predicated region
    $region34: #{tpu_custom_call.1} parent=1 // pred_check
      _
    $region35: #{tpu_custom_call.1} parent=1 // pred_check_branch
      %74 = sbr.rel (0) target = $region37
    $region36: #{tpu_custom_call.1} parent=1 // pred_region
      %75 = dma.done [#allocation8], 512
    $region37: #{tpu_custom_call.1} parent=1 // pred_fallthru
      _
    // Predicated region
    $region38: #{tpu_custom_call.1} parent=1 // pred_check
      _
    $region39: #{tpu_custom_call.1} parent=1 // pred_check_branch
      %77 = sbr.rel (0) target = $region41
    $region40: #{tpu_custom_call.1} parent=1 // pred_region
      %78 = dma.done [#allocation11], 512
    $region41: #{tpu_custom_call.1} parent=1 // pred_fallthru
      _
    %p79 = scmp.eq.s32.totalorder 0, 0
    // Predicated region
    $region42: #{tpu_custom_call.1} parent=1 // pred_check
      %p80 = pneg %p79
    $region43: #{tpu_custom_call.1} parent=1 // pred_check_branch
      %82 = sbr.rel (%p80) target = $region45
    $region44: #{tpu_custom_call.1} parent=1 // pred_region
      %vm83 = vcmask 261120
      %84 = vst.msk [vmem:[#allocation2] sm:$0xff] %vm83, 0.0
      %85 = vst.msk [vmem:[#allocation3] sm:$0xff] %vm83, 0.0
    $region45: #{tpu_custom_call.1} parent=1 // pred_fallthru
      _
    %v86 = vld [vmem:[%s3] sm:$0x1]
    %v88 = vlaneseq
    %v89 = vshrl.u32 %v88, 7
    %v90 = vsub.s32 0, %v89
    %v91 = vrot.slane %v86, %v90
    %v93 = vld [vmem:[#allocation4] sm:$0xff]
    %v94 = vld [vmem:[#allocation7] sm:$0xff]
    %v95 = vld [vmem:[#allocation7 + $0x8] sm:$0xff]
    %v96 = vld [vmem:[#allocation7 + $0x10] sm:$0xff]
    %v97 = vld [vmem:[#allocation7 + $0x18] sm:$0xff]
    %v98 = vld [vmem:[#allocation2] sm:$0xff]
    %v99 = vld [vmem:[#allocation9] sm:$0xff]
    %v100 = vld [vmem:[#allocation9 + $0x8] sm:$0xff]
    %v101 = vld [vmem:[#allocation9 + $0x10] sm:$0xff]
    %v102 = vld [vmem:[#allocation9 + $0x18] sm:$0xff]
    %vm103 = vcmask 261120
    %v105 = vsel %vm103, %v98, 0
    %107 = vmatprep.subr.mxu0 0.0
    %108 = vmatpush1.msra.mxu0 %v99
    %109 = vmatprep.subr.mxu0 0.0
    %110 = vmatpush1.msra.mxu0 %v100
    %111 = vmatprep.subr.mxu0 0.0
    %112 = vmatpush1.msra.mxu0 %v101
    %113 = vmatprep.subr.mxu0 0.0
    %114 = vmatpush1.msra.mxu0 %v102
    %115 = vmatprep.subr.mxu0 0.0
    %116 = vmatpush1.msra.mxu0 0.0
    %117 = vmatprep.subr.mxu0 0.0
    %118 = vmatpush1.msra.mxu0 0.0
    %119 = vmatprep.subr.mxu0 0.0
    %120 = vmatpush1.msra.mxu0 0.0
    %121 = vmatprep.subr.mxu0 0.0
    %122 = vmatpush1.msra.mxu0 0.0
    %123 = vmatprep.subr.mxu0 0.0
    %124 = vmatpush1.msra.mxu0 0.0
    %125 = vmatprep.subr.mxu0 0.0
    %126 = vmatpush1.msra.mxu0 0.0
    %127 = vmatprep.subr.mxu0 0.0
    %128 = vmatpush1.msra.mxu0 0.0
    %129 = vmatprep.subr.mxu0 0.0
    %130 = vmatpush1.msra.mxu0 0.0
    %131 = vmatprep.subr.mxu0 0.0
    %132 = vmatpush1.msra.mxu0 0.0
    %133 = vmatprep.subr.mxu0 0.0
    %134 = vmatpush1.msra.mxu0 0.0
    %135 = vmatprep.subr.mxu0 0.0
    %136 = vmatpush1.msra.mxu0 0.0
    %137 = vmatprep.subr.mxu0 0.0
    %138 = vmatpush1.msra.mxu0 0.0
    %139 = vmatprep.subr.mxu0 0.0
    %140 = vmatpush1.msra.mxu0 0.0
    %141 = vmatprep.subr.mxu0 0.0
    %142 = vmatpush1.msra.mxu0 0.0
    %143 = vmatprep.subr.mxu0 0.0
    %144 = vmatpush1.msra.mxu0 0.0
    %145 = vmatprep.subr.mxu0 0.0
    %146 = vmatpush1.msra.mxu0 0.0
    %147 = vmatprep.subr.mxu0 0.0
    %148 = vmatpush1.msra.mxu0 0.0
    %149 = vmatprep.subr.mxu0 0.0
    %150 = vmatpush1.msra.mxu0 0.0
    %151 = vmatprep.subr.mxu0 0.0
    %152 = vmatpush1.msra.mxu0 0.0
    %153 = vmatprep.subr.mxu0 0.0
    %154 = vmatpush1.msra.mxu0 0.0
    %155 = vmatprep.subr.mxu0 0.0
    %156 = vmatpush1.msra.mxu0 0.0
    %157 = vmatprep.subr.mxu0 0.0
    %158 = vmatpush1.msra.mxu0 0.0
    %159 = vmatprep.subr.mxu0 0.0
    %160 = vmatpush1.msra.mxu0 0.0
    %161 = vmatprep.subr.mxu0 0.0
    %162 = vmatpush1.msra.mxu0 0.0
    %163 = vmatprep.subr.mxu0 0.0
    %164 = vmatpush1.msra.mxu0 0.0
    %165 = vmatprep.subr.mxu0 0.0
    %166 = vmatpush1.msra.mxu0 0.0
    %167 = vmatprep.subr.mxu0 0.0
    %168 = vmatpush1.msra.mxu0 0.0
    %169 = vmatprep.subr.mxu0 0.0
    %170 = vmatpush1.msra.mxu0 0.0
    %171 = vmatprep.mubr.f32.mxu0 0.0
    %172 = vmatmul.mubr.f32.gmra.mrb[0].mxu0 %v105
    %v173 = vpop.f32.mrb[0].mxu0
    %v174 = vadd.f32 0.0, %v173
    %v175 = vpop.f32.mrb[0].mxu0
    %176 = vdwg.mxu0
    %v178 = vsel %vm103, %v93, 0
    %180 = vmatprep.subr.mxu0 0.0
    %181 = vmatpush1.msra.mxu0 %v94
    %182 = vmatprep.subr.mxu0 0.0
    %183 = vmatpush1.msra.mxu0 %v95
    %184 = vmatprep.subr.mxu0 0.0
    %185 = vmatpush1.msra.mxu0 %v96
    %186 = vmatprep.subr.mxu0 0.0
    %187 = vmatpush1.msra.mxu0 %v97
    %188 = vmatprep.subr.mxu0 0.0
    %189 = vmatpush1.msra.mxu0 0.0
    %190 = vmatprep.subr.mxu0 0.0
    %191 = vmatpush1.msra.mxu0 0.0
    %192 = vmatprep.subr.mxu0 0.0
    %193 = vmatpush1.msra.mxu0 0.0
    %194 = vmatprep.subr.mxu0 0.0
    %195 = vmatpush1.msra.mxu0 0.0
    %196 = vmatprep.subr.mxu0 0.0
    %197 = vmatpush1.msra.mxu0 0.0
    %198 = vmatprep.subr.mxu0 0.0
    %199 = vmatpush1.msra.mxu0 0.0
    %200 = vmatprep.subr.mxu0 0.0
    %201 = vmatpush1.msra.mxu0 0.0
    %202 = vmatprep.subr.mxu0 0.0
    %203 = vmatpush1.msra.mxu0 0.0
    %204 = vmatprep.subr.mxu0 0.0
    %205 = vmatpush1.msra.mxu0 0.0
    %206 = vmatprep.subr.mxu0 0.0
    %207 = vmatpush1.msra.mxu0 0.0
    %208 = vmatprep.subr.mxu0 0.0
    %209 = vmatpush1.msra.mxu0 0.0
    %210 = vmatprep.subr.mxu0 0.0
    %211 = vmatpush1.msra.mxu0 0.0
    %212 = vmatprep.subr.mxu0 0.0
    %213 = vmatpush1.msra.mxu0 0.0
    %214 = vmatprep.subr.mxu0 0.0
    %215 = vmatpush1.msra.mxu0 0.0
    %216 = vmatprep.subr.mxu0 0.0
    %217 = vmatpush1.msra.mxu0 0.0
    %218 = vmatprep.subr.mxu0 0.0
    %219 = vmatpush1.msra.mxu0 0.0
    %220 = vmatprep.subr.mxu0 0.0
    %221 = vmatpush1.msra.mxu0 0.0
    %222 = vmatprep.subr.mxu0 0.0
    %223 = vmatpush1.msra.mxu0 0.0
    %224 = vmatprep.subr.mxu0 0.0
    %225 = vmatpush1.msra.mxu0 0.0
    %226 = vmatprep.subr.mxu0 0.0
    %227 = vmatpush1.msra.mxu0 0.0
    %228 = vmatprep.subr.mxu0 0.0
    %229 = vmatpush1.msra.mxu0 0.0
    %230 = vmatprep.subr.mxu0 0.0
    %231 = vmatpush1.msra.mxu0 0.0
    %232 = vmatprep.subr.mxu0 0.0
    %233 = vmatpush1.msra.mxu0 0.0
    %234 = vmatprep.subr.mxu0 0.0
    %235 = vmatpush1.msra.mxu0 0.0
    %236 = vmatprep.subr.mxu0 0.0
    %237 = vmatpush1.msra.mxu0 0.0
    %238 = vmatprep.subr.mxu0 0.0
    %239 = vmatpush1.msra.mxu0 0.0
    %240 = vmatprep.subr.mxu0 0.0
    %241 = vmatpush1.msra.mxu0 0.0
    %242 = vmatprep.subr.mxu0 0.0
    %243 = vmatpush1.msra.mxu0 0.0
    %244 = vmatprep.mubr.f32.mxu0 0.0
    %245 = vmatmul.mubr.f32.gmra.mrb[0].mxu0 %v178
    %v246 = vpop.f32.mrb[0].mxu0
    %v247 = vadd.f32 %v174, %v246
    %v248 = vpop.f32.mrb[0].mxu0
    %249 = vdwg.mxu0
    %v250 = vadd.f32 %v247, %v91
    %v251 = vxor.u32 %v250, 2147483648
    %v252 = vmul.f32 %v251, 1.442695
    %v253 = vpow.pop %v252
    %v254 = vadd.f32 %v253, 1.0
    %v255 = vrcp.pop %v254
    %v256 = vmul.f32 1.0, %v255
    %v257 = vtanh.pop %v250
    %v258 = vld [vmem:[#allocation3] sm:$0xff]
    %260 = vrot.lane.b32.xlu0 %v258, 32
    %v261 = vpop.permute.xlu0 %260
    %v263 = vmul.f32 %v256, %v261
    %265 = vrot.lane.b32.xlu0 %v257, 64
    %v266 = vpop.permute.xlu0 %265
    %v268 = vmul.f32 %v256, %v266
    %270 = vrot.lane.b32.xlu0 %v268, 32
    %v271 = vpop.permute.xlu0 %270
    %v273 = vadd.f32 %v263, %v271
    %v274 = vtanh.pop %v273
    %276 = vrot.lane.b32.xlu0 %v274, 64
    %v277 = vpop.permute.xlu0 %276
    %v279 = vmul.f32 %v256, %v277
    %281 = vrot.lane.b32.xlu0 %v279, 32
    %v282 = vpop.permute.xlu0 %281
    %284 = vst.msk [vmem:[#allocation2] sm:$0xff] %vm103, %v282
    %286 = vrot.lane.b32.xlu0 %v273, 96
    %v287 = vpop.permute.xlu0 %286
    %289 = vst.msk [vmem:[#allocation3] sm:$0xff] %vm103, %v287
    %s290 = scalar_lea.vmem [#allocation4], 8
    %v291 = vld [vmem:[%s290] sm:$0xff]
    %v292 = vld [vmem:[#allocation7] sm:$0xff]
    %v293 = vld [vmem:[#allocation7 + $0x8] sm:$0xff]
    %v294 = vld [vmem:[#allocation7 + $0x10] sm:$0xff]
    %v295 = vld [vmem:[#allocation7 + $0x18] sm:$0xff]
    %v296 = vld [vmem:[#allocation2] sm:$0xff]
    %v297 = vld [vmem:[#allocation9] sm:$0xff]
    %v298 = vld [vmem:[#allocation9 + $0x8] sm:$0xff]
    %v299 = vld [vmem:[#allocation9 + $0x10] sm:$0xff]
    %v300 = vld [vmem:[#allocation9 + $0x18] sm:$0xff]
    %v302 = vsel %vm103, %v296, 0
    %304 = vmatprep.subr.mxu0 0.0
    %305 = vmatpush1.msra.mxu0 %v297
    %306 = vmatprep.subr.mxu0 0.0
    %307 = vmatpush1.msra.mxu0 %v298
    %308 = vmatprep.subr.mxu0 0.0
    %309 = vmatpush1.msra.mxu0 %v299
    %310 = vmatprep.subr.mxu0 0.0
    %311 = vmatpush1.msra.mxu0 %v300
    %312 = vmatprep.subr.mxu0 0.0
    %313 = vmatpush1.msra.mxu0 0.0
    %314 = vmatprep.subr.mxu0 0.0
    %315 = vmatpush1.msra.mxu0 0.0
    %316 = vmatprep.subr.mxu0 0.0
    %317 = vmatpush1.msra.mxu0 0.0
    %318 = vmatprep.subr.mxu0 0.0
    %319 = vmatpush1.msra.mxu0 0.0
    %320 = vmatprep.subr.mxu0 0.0
    %321 = vmatpush1.msra.mxu0 0.0
    %322 = vmatprep.subr.mxu0 0.0
    %323 = vmatpush1.msra.mxu0 0.0
    %324 = vmatprep.subr.mxu0 0.0
    %325 = vmatpush1.msra.mxu0 0.0
    %326 = vmatprep.subr.mxu0 0.0
    %327 = vmatpush1.msra.mxu0 0.0
    %328 = vmatprep.subr.mxu0 0.0
    %329 = vmatpush1.msra.mxu0 0.0
    %330 = vmatprep.subr.mxu0 0.0
    %331 = vmatpush1.msra.mxu0 0.0
    %332 = vmatprep.subr.mxu0 0.0
    %333 = vmatpush1.msra.mxu0 0.0
    %334 = vmatprep.subr.mxu0 0.0
    %335 = vmatpush1.msra.mxu0 0.0
    %336 = vmatprep.subr.mxu0 0.0
    %337 = vmatpush1.msra.mxu0 0.0
    %338 = vmatprep.subr.mxu0 0.0
    %339 = vmatpush1.msra.mxu0 0.0
    %340 = vmatprep.subr.mxu0 0.0
    %341 = vmatpush1.msra.mxu0 0.0
    %342 = vmatprep.subr.mxu0 0.0
    %343 = vmatpush1.msra.mxu0 0.0
    %344 = vmatprep.subr.mxu0 0.0
    %345 = vmatpush1.msra.mxu0 0.0
    %346 = vmatprep.subr.mxu0 0.0
    %347 = vmatpush1.msra.mxu0 0.0
    %348 = vmatprep.subr.mxu0 0.0
    %349 = vmatpush1.msra.mxu0 0.0
    %350 = vmatprep.subr.mxu0 0.0
    %351 = vmatpush1.msra.mxu0 0.0
    %352 = vmatprep.subr.mxu0 0.0
    %353 = vmatpush1.msra.mxu0 0.0
    %354 = vmatprep.subr.mxu0 0.0
    %355 = vmatpush1.msra.mxu0 0.0
    %356 = vmatprep.subr.mxu0 0.0
    %357 = vmatpush1.msra.mxu0 0.0
    %358 = vmatprep.subr.mxu0 0.0
    %359 = vmatpush1.msra.mxu0 0.0
    %360 = vmatprep.subr.mxu0 0.0
    %361 = vmatpush1.msra.mxu0 0.0
    %362 = vmatprep.subr.mxu0 0.0
    %363 = vmatpush1.msra.mxu0 0.0
    %364 = vmatprep.subr.mxu0 0.0
    %365 = vmatpush1.msra.mxu0 0.0
    %366 = vmatprep.subr.mxu0 0.0
    %367 = vmatpush1.msra.mxu0 0.0
    %368 = vmatprep.mubr.f32.mxu0 0.0
    %369 = vmatmul.mubr.f32.gmra.mrb[0].mxu0 %v302
    %v370 = vpop.f32.mrb[0].mxu0
    %v371 = vadd.f32 0.0, %v370
    %v372 = vpop.f32.mrb[0].mxu0
    %373 = vdwg.mxu0
    %v375 = vsel %vm103, %v291, 0
    %377 = vmatprep.subr.mxu0 0.0
    %378 = vmatpush1.msra.mxu0 %v292
    %379 = vmatprep.subr.mxu0 0.0
    %380 = vmatpush1.msra.mxu0 %v293
    %381 = vmatprep.subr.mxu0 0.0
    %382 = vmatpush1.msra.mxu0 %v294
    %383 = vmatprep.subr.mxu0 0.0
    %384 = vmatpush1.msra.mxu0 %v295
    %385 = vmatprep.subr.mxu0 0.0
    %386 = vmatpush1.msra.mxu0 0.0
    %387 = vmatprep.subr.mxu0 0.0
    %388 = vmatpush1.msra.mxu0 0.0
    %389 = vmatprep.subr.mxu0 0.0
    %390 = vmatpush1.msra.mxu0 0.0
    %391 = vmatprep.subr.mxu0 0.0
    %392 = vmatpush1.msra.mxu0 0.0
    %393 = vmatprep.subr.mxu0 0.0
    %394 = vmatpush1.msra.mxu0 0.0
    %395 = vmatprep.subr.mxu0 0.0
    %396 = vmatpush1.msra.mxu0 0.0
    %397 = vmatprep.subr.mxu0 0.0
    %398 = vmatpush1.msra.mxu0 0.0
    %399 = vmatprep.subr.mxu0 0.0
    %400 = vmatpush1.msra.mxu0 0.0
    %401 = vmatprep.subr.mxu0 0.0
    %402 = vmatpush1.msra.mxu0 0.0
    %403 = vmatprep.subr.mxu0 0.0
    %404 = vmatpush1.msra.mxu0 0.0
    %405 = vmatprep.subr.mxu0 0.0
    %406 = vmatpush1.msra.mxu0 0.0
    %407 = vmatprep.subr.mxu0 0.0
    %408 = vmatpush1.msra.mxu0 0.0
    %409 = vmatprep.subr.mxu0 0.0
    %410 = vmatpush1.msra.mxu0 0.0
    %411 = vmatprep.subr.mxu0 0.0
    %412 = vmatpush1.msra.mxu0 0.0
    %413 = vmatprep.subr.mxu0 0.0
    %414 = vmatpush1.msra.mxu0 0.0
    %415 = vmatprep.subr.mxu0 0.0
    %416 = vmatpush1.msra.mxu0 0.0
    %417 = vmatprep.subr.mxu0 0.0
    %418 = vmatpush1.msra.mxu0 0.0
    %419 = vmatprep.subr.mxu0 0.0
    %420 = vmatpush1.msra.mxu0 0.0
    %421 = vmatprep.subr.mxu0 0.0
    %422 = vmatpush1.msra.mxu0 0.0
    %423 = vmatprep.subr.mxu0 0.0
    %424 = vmatpush1.msra.mxu0 0.0
    %425 = vmatprep.subr.mxu0 0.0
    %426 = vmatpush1.msra.mxu0 0.0
    %427 = vmatprep.subr.mxu0 0.0
    %428 = vmatpush1.msra.mxu0 0.0
    %429 = vmatprep.subr.mxu0 0.0
    %430 = vmatpush1.msra.mxu0 0.0
    %431 = vmatprep.subr.mxu0 0.0
    %432 = vmatpush1.msra.mxu0 0.0
    %433 = vmatprep.subr.mxu0 0.0
    %434 = vmatpush1.msra.mxu0 0.0
    %435 = vmatprep.subr.mxu0 0.0
    %436 = vmatpush1.msra.mxu0 0.0
    %437 = vmatprep.subr.mxu0 0.0
    %438 = vmatpush1.msra.mxu0 0.0
    %439 = vmatprep.subr.mxu0 0.0
    %440 = vmatpush1.msra.mxu0 0.0
    %441 = vmatprep.mubr.f32.mxu0 0.0
    %442 = vmatmul.mubr.f32.gmra.mrb[0].mxu0 %v375
    %v443 = vpop.f32.mrb[0].mxu0
    %v444 = vadd.f32 %v371, %v443
    %v445 = vpop.f32.mrb[0].mxu0
    %446 = vdwg.mxu0
    %v447 = vadd.f32 %v444, %v91
    %v448 = vxor.u32 %v447, 2147483648
    %v449 = vmul.f32 %v448, 1.442695
    %v450 = vpow.pop %v449
    %v451 = vadd.f32 %v450, 1.0
    %v452 = vrcp.pop %v451
    %v453 = vmul.f32 1.0, %v452
    %v454 = vtanh.pop %v447
    %v455 = vld [vmem:[#allocation3] sm:$0xff]
    %457 = vrot.lane.b32.xlu0 %v455, 32
    %v458 = vpop.permute.xlu0 %457
    %v460 = vmul.f32 %v453, %v458
    %462 = vrot.lane.b32.xlu0 %v454, 64
    %v463 = vpop.permute.xlu0 %462
    %v465 = vmul.f32 %v453, %v463
    %467 = vrot.lane.b32.xlu0 %v465, 32
    %v468 = vpop.permute.xlu0 %467
    %v470 = vadd.f32 %v460, %v468
    %v471 = vtanh.pop %v470
    %473 = vrot.lane.b32.xlu0 %v471, 64
    %v474 = vpop.permute.xlu0 %473
    %v476 = vmul.f32 %v453, %v474
    %478 = vrot.lane.b32.xlu0 %v476, 32
    %v479 = vpop.permute.xlu0 %478
    %481 = vst.msk [vmem:[#allocation2] sm:$0xff] %vm103, %v479
    %483 = vrot.lane.b32.xlu0 %v470, 96
    %v484 = vpop.permute.xlu0 %483
    %486 = vst.msk [vmem:[#allocation3] sm:$0xff] %vm103, %v484
    %s487 = scalar_lea.vmem [#allocation4], 16
    %v488 = vld [vmem:[%s487] sm:$0xff]
    %v489 = vld [vmem:[#allocation7] sm:$0xff]
    %v490 = vld [vmem:[#allocation7 + $0x8] sm:$0xff]
    %v491 = vld [vmem:[#allocation7 + $0x10] sm:$0xff]
    %v492 = vld [vmem:[#allocation7 + $0x18] sm:$0xff]
    %v493 = vld [vmem:[#allocation2] sm:$0xff]
    %v494 = vld [vmem:[#allocation9] sm:$0xff]
    %v495 = vld [vmem:[#allocation9 + $0x8] sm:$0xff]
    %v496 = vld [vmem:[#allocation9 + $0x10] sm:$0xff]
    %v497 = vld [vmem:[#allocation9 + $0x18] sm:$0xff]
    %v499 = vsel %vm103, %v493, 0
    %501 = vmatprep.subr.mxu0 0.0
    %502 = vmatpush1.msra.mxu0 %v494
    %503 = vmatprep.subr.mxu0 0.0
    %504 = vmatpush1.msra.mxu0 %v495
    %505 = vmatprep.subr.mxu0 0.0
    %506 = vmatpush1.msra.mxu0 %v496
    %507 = vmatprep.subr.mxu0 0.0
    %508 = vmatpush1.msra.mxu0 %v497
    %509 = vmatprep.subr.mxu0 0.0
    %510 = vmatpush1.msra.mxu0 0.0
    %511 = vmatprep.subr.mxu0 0.0
    %512 = vmatpush1.msra.mxu0 0.0
    %513 = vmatprep.subr.mxu0 0.0
    %514 = vmatpush1.msra.mxu0 0.0
    %515 = vmatprep.subr.mxu0 0.0
    %516 = vmatpush1.msra.mxu0 0.0
    %517 = vmatprep.subr.mxu0 0.0
    %518 = vmatpush1.msra.mxu0 0.0
    %519 = vmatprep.subr.mxu0 0.0
    %520 = vmatpush1.msra.mxu0 0.0
    %521 = vmatprep.subr.mxu0 0.0
    %522 = vmatpush1.msra.mxu0 0.0
    %523 = vmatprep.subr.mxu0 0.0
    %524 = vmatpush1.msra.mxu0 0.0
    %525 = vmatprep.subr.mxu0 0.0
    %526 = vmatpush1.msra.mxu0 0.0
    %527 = vmatprep.subr.mxu0 0.0
    %528 = vmatpush1.msra.mxu0 0.0
    %529 = vmatprep.subr.mxu0 0.0
    %530 = vmatpush1.msra.mxu0 0.0
    %531 = vmatprep.subr.mxu0 0.0
    %532 = vmatpush1.msra.mxu0 0.0
    %533 = vmatprep.subr.mxu0 0.0
    %534 = vmatpush1.msra.mxu0 0.0
    %535 = vmatprep.subr.mxu0 0.0
    %536 = vmatpush1.msra.mxu0 0.0
    %537 = vmatprep.subr.mxu0 0.0
    %538 = vmatpush1.msra.mxu0 0.0
    %539 = vmatprep.subr.mxu0 0.0
    %540 = vmatpush1.msra.mxu0 0.0
    %541 = vmatprep.subr.mxu0 0.0
    %542 = vmatpush1.msra.mxu0 0.0
    %543 = vmatprep.subr.mxu0 0.0
    %544 = vmatpush1.msra.mxu0 0.0
    %545 = vmatprep.subr.mxu0 0.0
    %546 = vmatpush1.msra.mxu0 0.0
    %547 = vmatprep.subr.mxu0 0.0
    %548 = vmatpush1.msra.mxu0 0.0
    %549 = vmatprep.subr.mxu0 0.0
    %550 = vmatpush1.msra.mxu0 0.0
    %551 = vmatprep.subr.mxu0 0.0
    %552 = vmatpush1.msra.mxu0 0.0
    %553 = vmatprep.subr.mxu0 0.0
    %554 = vmatpush1.msra.mxu0 0.0
    %555 = vmatprep.subr.mxu0 0.0
    %556 = vmatpush1.msra.mxu0 0.0
    %557 = vmatprep.subr.mxu0 0.0
    %558 = vmatpush1.msra.mxu0 0.0
    %559 = vmatprep.subr.mxu0 0.0
    %560 = vmatpush1.msra.mxu0 0.0
    %561 = vmatprep.subr.mxu0 0.0
    %562 = vmatpush1.msra.mxu0 0.0
    %563 = vmatprep.subr.mxu0 0.0
    %564 = vmatpush1.msra.mxu0 0.0
    %565 = vmatprep.mubr.f32.mxu0 0.0
    %566 = vmatmul.mubr.f32.gmra.mrb[0].mxu0 %v499
    %v567 = vpop.f32.mrb[0].mxu0
    %v568 = vadd.f32 0.0, %v567
    %v569 = vpop.f32.mrb[0].mxu0
    %570 = vdwg.mxu0
    %v572 = vsel %vm103, %v488, 0
    %574 = vmatprep.subr.mxu0 0.0
    %575 = vmatpush1.msra.mxu0 %v489
    %576 = vmatprep.subr.mxu0 0.0
    %577 = vmatpush1.msra.mxu0 %v490
    %578 = vmatprep.subr.mxu0 0.0
    %579 = vmatpush1.msra.mxu0 %v491
    %580 = vmatprep.subr.mxu0 0.0
    %581 = vmatpush1.msra.mxu0 %v492
    %582 = vmatprep.subr.mxu0 0.0
    %583 = vmatpush1.msra.mxu0 0.0
    %584 = vmatprep.subr.mxu0 0.0
    %585 = vmatpush1.msra.mxu0 0.0
    %586 = vmatprep.subr.mxu0 0.0
    %587 = vmatpush1.msra.mxu0 0.0
    %588 = vmatprep.subr.mxu0 0.0
    %589 = vmatpush1.msra.mxu0 0.0
    %590 = vmatprep.subr.mxu0 0.0
    %591 = vmatpush1.msra.mxu0 0.0
    %592 = vmatprep.subr.mxu0 0.0
    %593 = vmatpush1.msra.mxu0 0.0
    %594 = vmatprep.subr.mxu0 0.0
    %595 = vmatpush1.msra.mxu0 0.0
    %596 = vmatprep.subr.mxu0 0.0
    %597 = vmatpush1.msra.mxu0 0.0
    %598 = vmatprep.subr.mxu0 0.0
    %599 = vmatpush1.msra.mxu0 0.0
    %600 = vmatprep.subr.mxu0 0.0
    %601 = vmatpush1.msra.mxu0 0.0
    %602 = vmatprep.subr.mxu0 0.0
    %603 = vmatpush1.msra.mxu0 0.0
    %604 = vmatprep.subr.mxu0 0.0
    %605 = vmatpush1.msra.mxu0 0.0
    %606 = vmatprep.subr.mxu0 0.0
    %607 = vmatpush1.msra.mxu0 0.0
    %608 = vmatprep.subr.mxu0 0.0
    %609 = vmatpush1.msra.mxu0 0.0
    %610 = vmatprep.subr.mxu0 0.0
    %611 = vmatpush1.msra.mxu0 0.0
    %612 = vmatprep.subr.mxu0 0.0
    %613 = vmatpush1.msra.mxu0 0.0
    %614 = vmatprep.subr.mxu0 0.0
    %615 = vmatpush1.msra.mxu0 0.0
    %616 = vmatprep.subr.mxu0 0.0
    %617 = vmatpush1.msra.mxu0 0.0
    %618 = vmatprep.subr.mxu0 0.0
    %619 = vmatpush1.msra.mxu0 0.0
    %620 = vmatprep.subr.mxu0 0.0
    %621 = vmatpush1.msra.mxu0 0.0
    %622 = vmatprep.subr.mxu0 0.0
    %623 = vmatpush1.msra.mxu0 0.0
    %624 = vmatprep.subr.mxu0 0.0
    %625 = vmatpush1.msra.mxu0 0.0
    %626 = vmatprep.subr.mxu0 0.0
    %627 = vmatpush1.msra.mxu0 0.0
    %628 = vmatprep.subr.mxu0 0.0
    %629 = vmatpush1.msra.mxu0 0.0
    %630 = vmatprep.subr.mxu0 0.0
    %631 = vmatpush1.msra.mxu0 0.0
    %632 = vmatprep.subr.mxu0 0.0
    %633 = vmatpush1.msra.mxu0 0.0
    %634 = vmatprep.subr.mxu0 0.0
    %635 = vmatpush1.msra.mxu0 0.0
    %636 = vmatprep.subr.mxu0 0.0
    %637 = vmatpush1.msra.mxu0 0.0
    %638 = vmatprep.mubr.f32.mxu0 0.0
    %639 = vmatmul.mubr.f32.gmra.mrb[0].mxu0 %v572
    %v640 = vpop.f32.mrb[0].mxu0
    %v641 = vadd.f32 %v568, %v640
    %v642 = vpop.f32.mrb[0].mxu0
    %643 = vdwg.mxu0
    %v644 = vadd.f32 %v641, %v91
    %v645 = vxor.u32 %v644, 2147483648
    %v646 = vmul.f32 %v645, 1.442695
    %v647 = vpow.pop %v646
    %v648 = vadd.f32 %v647, 1.0
    %v649 = vrcp.pop %v648
    %v650 = vmul.f32 1.0, %v649
    %v651 = vtanh.pop %v644
    %v652 = vld [vmem:[#allocation3] sm:$0xff]
    %654 = vrot.lane.b32.xlu0 %v652, 32
    %v655 = vpop.permute.xlu0 %654
    %v657 = vmul.f32 %v650, %v655
    %659 = vrot.lane.b32.xlu0 %v651, 64
    %v660 = vpop.permute.xlu0 %659
    %v662 = vmul.f32 %v650, %v660
    %664 = vrot.lane.b32.xlu0 %v662, 32
    %v665 = vpop.permute.xlu0 %664
    %v667 = vadd.f32 %v657, %v665
    %v668 = vtanh.pop %v667
    %670 = vrot.lane.b32.xlu0 %v668, 64
    %v671 = vpop.permute.xlu0 %670
    %v673 = vmul.f32 %v650, %v671
    %675 = vrot.lane.b32.xlu0 %v673, 32
    %v676 = vpop.permute.xlu0 %675
    %678 = vst.msk [vmem:[#allocation2] sm:$0xff] %vm103, %v676
    %680 = vrot.lane.b32.xlu0 %v667, 96
    %v681 = vpop.permute.xlu0 %680
    %683 = vst.msk [vmem:[#allocation3] sm:$0xff] %vm103, %v681
    %s684 = scalar_lea.vmem [#allocation4], 24
    %v685 = vld [vmem:[%s684] sm:$0xff]
    %v686 = vld [vmem:[#allocation7] sm:$0xff]
    %v687 = vld [vmem:[#allocation7 + $0x8] sm:$0xff]
    %v688 = vld [vmem:[#allocation7 + $0x10] sm:$0xff]
    %v689 = vld [vmem:[#allocation7 + $0x18] sm:$0xff]
    %v690 = vld [vmem:[#allocation2] sm:$0xff]
    %v691 = vld [vmem:[#allocation9] sm:$0xff]
    %v692 = vld [vmem:[#allocation9 + $0x8] sm:$0xff]
    %v693 = vld [vmem:[#allocation9 + $0x10] sm:$0xff]
    %v694 = vld [vmem:[#allocation9 + $0x18] sm:$0xff]
    %v696 = vsel %vm103, %v690, 0
    %698 = vmatprep.subr.mxu0 0.0
    %699 = vmatpush1.msra.mxu0 %v691
    %700 = vmatprep.subr.mxu0 0.0
    %701 = vmatpush1.msra.mxu0 %v692
    %702 = vmatprep.subr.mxu0 0.0
    %703 = vmatpush1.msra.mxu0 %v693
    %704 = vmatprep.subr.mxu0 0.0
    %705 = vmatpush1.msra.mxu0 %v694
    %706 = vmatprep.subr.mxu0 0.0
    %707 = vmatpush1.msra.mxu0 0.0
    %708 = vmatprep.subr.mxu0 0.0
    %709 = vmatpush1.msra.mxu0 0.0
    %710 = vmatprep.subr.mxu0 0.0
    %711 = vmatpush1.msra.mxu0 0.0
    %712 = vmatprep.subr.mxu0 0.0
    %713 = vmatpush1.msra.mxu0 0.0
    %714 = vmatprep.subr.mxu0 0.0
    %715 = vmatpush1.msra.mxu0 0.0
    %716 = vmatprep.subr.mxu0 0.0
    %717 = vmatpush1.msra.mxu0 0.0
    %718 = vmatprep.subr.mxu0 0.0
    %719 = vmatpush1.msra.mxu0 0.0
    %720 = vmatprep.subr.mxu0 0.0
    %721 = vmatpush1.msra.mxu0 0.0
    %722 = vmatprep.subr.mxu0 0.0
    %723 = vmatpush1.msra.mxu0 0.0
    %724 = vmatprep.subr.mxu0 0.0
    %725 = vmatpush1.msra.mxu0 0.0
    %726 = vmatprep.subr.mxu0 0.0
    %727 = vmatpush1.msra.mxu0 0.0
    %728 = vmatprep.subr.mxu0 0.0
    %729 = vmatpush1.msra.mxu0 0.0
    %730 = vmatprep.subr.mxu0 0.0
    %731 = vmatpush1.msra.mxu0 0.0
    %732 = vmatprep.subr.mxu0 0.0
    %733 = vmatpush1.msra.mxu0 0.0
    %734 = vmatprep.subr.mxu0 0.0
    %735 = vmatpush1.msra.mxu0 0.0
    %736 = vmatprep.subr.mxu0 0.0
    %737 = vmatpush1.msra.mxu0 0.0
    %738 = vmatprep.subr.mxu0 0.0
    %739 = vmatpush1.msra.mxu0 0.0
    %740 = vmatprep.subr.mxu0 0.0
    %741 = vmatpush1.msra.mxu0 0.0
    %742 = vmatprep.subr.mxu0 0.0
    %743 = vmatpush1.msra.mxu0 0.0
    %744 = vmatprep.subr.mxu0 0.0
    %745 = vmatpush1.msra.mxu0 0.0
    %746 = vmatprep.subr.mxu0 0.0
    %747 = vmatpush1.msra.mxu0 0.0
    %748 = vmatprep.subr.mxu0 0.0
    %749 = vmatpush1.msra.mxu0 0.0
    %750 = vmatprep.subr.mxu0 0.0
    %751 = vmatpush1.msra.mxu0 0.0
    %752 = vmatprep.subr.mxu0 0.0
    %753 = vmatpush1.msra.mxu0 0.0
    %754 = vmatprep.subr.mxu0 0.0
    %755 = vmatpush1.msra.mxu0 0.0
    %756 = vmatprep.subr.mxu0 0.0
    %757 = vmatpush1.msra.mxu0 0.0
    %758 = vmatprep.subr.mxu0 0.0
    %759 = vmatpush1.msra.mxu0 0.0
    %760 = vmatprep.subr.mxu0 0.0
    %761 = vmatpush1.msra.mxu0 0.0
    %762 = vmatprep.mubr.f32.mxu0 0.0
    %763 = vmatmul.mubr.f32.gmra.mrb[0].mxu0 %v696
    %v764 = vpop.f32.mrb[0].mxu0
    %v765 = vadd.f32 0.0, %v764
    %v766 = vpop.f32.mrb[0].mxu0
    %767 = vdwg.mxu0
    %v769 = vsel %vm103, %v685, 0
    %771 = vmatprep.subr.mxu0 0.0
    %772 = vmatpush1.msra.mxu0 %v686
    %773 = vmatprep.subr.mxu0 0.0
    %774 = vmatpush1.msra.mxu0 %v687
    %775 = vmatprep.subr.mxu0 0.0
    %776 = vmatpush1.msra.mxu0 %v688
    %777 = vmatprep.subr.mxu0 0.0
    %778 = vmatpush1.msra.mxu0 %v689
    %779 = vmatprep.subr.mxu0 0.0
    %780 = vmatpush1.msra.mxu0 0.0
    %781 = vmatprep.subr.mxu0 0.0
    %782 = vmatpush1.msra.mxu0 0.0
    %783 = vmatprep.subr.mxu0 0.0
    %784 = vmatpush1.msra.mxu0 0.0
    %785 = vmatprep.subr.mxu0 0.0
    %786 = vmatpush1.msra.mxu0 0.0
    %787 = vmatprep.subr.mxu0 0.0
    %788 = vmatpush1.msra.mxu0 0.0
    %789 = vmatprep.subr.mxu0 0.0
    %790 = vmatpush1.msra.mxu0 0.0
    %791 = vmatprep.subr.mxu0 0.0
    %792 = vmatpush1.msra.mxu0 0.0
    %793 = vmatprep.subr.mxu0 0.0
    %794 = vmatpush1.msra.mxu0 0.0
    %795 = vmatprep.subr.mxu0 0.0
    %796 = vmatpush1.msra.mxu0 0.0
    %797 = vmatprep.subr.mxu0 0.0
    %798 = vmatpush1.msra.mxu0 0.0
    %799 = vmatprep.subr.mxu0 0.0
    %800 = vmatpush1.msra.mxu0 0.0
    %801 = vmatprep.subr.mxu0 0.0
    %802 = vmatpush1.msra.mxu0 0.0
    %803 = vmatprep.subr.mxu0 0.0
    %804 = vmatpush1.msra.mxu0 0.0
    %805 = vmatprep.subr.mxu0 0.0
    %806 = vmatpush1.msra.mxu0 0.0
    %807 = vmatprep.subr.mxu0 0.0
    %808 = vmatpush1.msra.mxu0 0.0
    %809 = vmatprep.subr.mxu0 0.0
    %810 = vmatpush1.msra.mxu0 0.0
    %811 = vmatprep.subr.mxu0 0.0
    %812 = vmatpush1.msra.mxu0 0.0
    %813 = vmatprep.subr.mxu0 0.0
    %814 = vmatpush1.msra.mxu0 0.0
    %815 = vmatprep.subr.mxu0 0.0
    %816 = vmatpush1.msra.mxu0 0.0
    %817 = vmatprep.subr.mxu0 0.0
    %818 = vmatpush1.msra.mxu0 0.0
    %819 = vmatprep.subr.mxu0 0.0
    %820 = vmatpush1.msra.mxu0 0.0
    %821 = vmatprep.subr.mxu0 0.0
    %822 = vmatpush1.msra.mxu0 0.0
    %823 = vmatprep.subr.mxu0 0.0
    %824 = vmatpush1.msra.mxu0 0.0
    %825 = vmatprep.subr.mxu0 0.0
    %826 = vmatpush1.msra.mxu0 0.0
    %827 = vmatprep.subr.mxu0 0.0
    %828 = vmatpush1.msra.mxu0 0.0
    %829 = vmatprep.subr.mxu0 0.0
    %830 = vmatpush1.msra.mxu0 0.0
    %831 = vmatprep.subr.mxu0 0.0
    %832 = vmatpush1.msra.mxu0 0.0
    %833 = vmatprep.subr.mxu0 0.0
    %834 = vmatpush1.msra.mxu0 0.0
    %835 = vmatprep.mubr.f32.mxu0 0.0
    %836 = vmatmul.mubr.f32.gmra.mrb[0].mxu0 %v769
    %v837 = vpop.f32.mrb[0].mxu0
    %v838 = vadd.f32 %v765, %v837
    %v839 = vpop.f32.mrb[0].mxu0
    %840 = vdwg.mxu0
    %v841 = vadd.f32 %v838, %v91
    %v842 = vxor.u32 %v841, 2147483648
    %v843 = vmul.f32 %v842, 1.442695
    %v844 = vpow.pop %v843
    %v845 = vadd.f32 %v844, 1.0
    %v846 = vrcp.pop %v845
    %v847 = vmul.f32 1.0, %v846
    %v848 = vtanh.pop %v841
    %v849 = vld [vmem:[#allocation3] sm:$0xff]
    %851 = vrot.lane.b32.xlu0 %v849, 32
    %v852 = vpop.permute.xlu0 %851
    %v854 = vmul.f32 %v847, %v852
    %856 = vrot.lane.b32.xlu0 %v848, 64
    %v857 = vpop.permute.xlu0 %856
    %v859 = vmul.f32 %v847, %v857
    %861 = vrot.lane.b32.xlu0 %v859, 32
    %v862 = vpop.permute.xlu0 %861
    %v864 = vadd.f32 %v854, %v862
    %v865 = vtanh.pop %v864
    %867 = vrot.lane.b32.xlu0 %v865, 64
    %v868 = vpop.permute.xlu0 %867
    %v870 = vmul.f32 %v847, %v868
    %872 = vrot.lane.b32.xlu0 %v870, 32
    %v873 = vpop.permute.xlu0 %872
    %875 = vst.msk [vmem:[#allocation2] sm:$0xff] %vm103, %v873
    %877 = vrot.lane.b32.xlu0 %v864, 96
    %v878 = vpop.permute.xlu0 %877
    %880 = vst.msk [vmem:[#allocation3] sm:$0xff] %vm103, %v878
    %s881 = scalar_lea.vmem [#allocation4], 32
    %v882 = vld [vmem:[%s881] sm:$0xff]
    %v883 = vld [vmem:[#allocation7] sm:$0xff]
    %v884 = vld [vmem:[#allocation7 + $0x8] sm:$0xff]
    %v885 = vld [vmem:[#allocation7 + $0x10] sm:$0xff]
    %v886 = vld [vmem:[#allocation7 + $0x18] sm:$0xff]
    %v887 = vld [vmem:[#allocation2] sm:$0xff]
    %v888 = vld [vmem:[#allocation9] sm:$0xff]
    %v889 = vld [vmem:[#allocation9 + $0x8] sm:$0xff]
    %v890 = vld [vmem:[#allocation9 + $0x10] sm:$0xff]
    %v891 = vld [vmem:[#allocation9 + $0x18] sm:$0xff]
    %v893 = vsel %vm103, %v887, 0
    %895 = vmatprep.subr.mxu0 0.0
    %896 = vmatpush1.msra.mxu0 %v888
    %897 = vmatprep.subr.mxu0 0.0
    %898 = vmatpush1.msra.mxu0 %v889
    %899 = vmatprep.subr.mxu0 0.0
    %900 = vmatpush1.msra.mxu0 %v890
    %901 = vmatprep.subr.mxu0 0.0
    %902 = vmatpush1.msra.mxu0 %v891
    %903 = vmatprep.subr.mxu0 0.0
    %904 = vmatpush1.msra.mxu0 0.0
    %905 = vmatprep.subr.mxu0 0.0
    %906 = vmatpush1.msra.mxu0 0.0
    %907 = vmatprep.subr.mxu0 0.0
    %908 = vmatpush1.msra.mxu0 0.0
    %909 = vmatprep.subr.mxu0 0.0
    %910 = vmatpush1.msra.mxu0 0.0
    %911 = vmatprep.subr.mxu0 0.0
    %912 = vmatpush1.msra.mxu0 0.0
    %913 = vmatprep.subr.mxu0 0.0
    %914 = vmatpush1.msra.mxu0 0.0
    %915 = vmatprep.subr.mxu0 0.0
    %916 = vmatpush1.msra.mxu0 0.0
    %917 = vmatprep.subr.mxu0 0.0
    %918 = vmatpush1.msra.mxu0 0.0
    %919 = vmatprep.subr.mxu0 0.0
    %920 = vmatpush1.msra.mxu0 0.0
    %921 = vmatprep.subr.mxu0 0.0
    %922 = vmatpush1.msra.mxu0 0.0
    %923 = vmatprep.subr.mxu0 0.0
    %924 = vmatpush1.msra.mxu0 0.0
    %925 = vmatprep.subr.mxu0 0.0
    %926 = vmatpush1.msra.mxu0 0.0
    %927 = vmatprep.subr.mxu0 0.0
    %928 = vmatpush1.msra.mxu0 0.0
    %929 = vmatprep.subr.mxu0 0.0
    %930 = vmatpush1.msra.mxu0 0.0
    %931 = vmatprep.subr.mxu0 0.0
    %932 = vmatpush1.msra.mxu0 0.0
    %933 = vmatprep.subr.mxu0 0.0
    %934 = vmatpush1.msra.mxu0 0.0
    %935 = vmatprep.subr.mxu0 0.0
    %936 = vmatpush1.msra.mxu0 0.0
    %937 = vmatprep.subr.mxu0 0.0
    %938 = vmatpush1.msra.mxu0 0.0
    %939 = vmatprep.subr.mxu0 0.0
    %940 = vmatpush1.msra.mxu0 0.0
    %941 = vmatprep.subr.mxu0 0.0
    %942 = vmatpush1.msra.mxu0 0.0
    %943 = vmatprep.subr.mxu0 0.0
    %944 = vmatpush1.msra.mxu0 0.0
    %945 = vmatprep.subr.mxu0 0.0
    %946 = vmatpush1.msra.mxu0 0.0
    %947 = vmatprep.subr.mxu0 0.0
    %948 = vmatpush1.msra.mxu0 0.0
    %949 = vmatprep.subr.mxu0 0.0
    %950 = vmatpush1.msra.mxu0 0.0
    %951 = vmatprep.subr.mxu0 0.0
    %952 = vmatpush1.msra.mxu0 0.0
    %953 = vmatprep.subr.mxu0 0.0
    %954 = vmatpush1.msra.mxu0 0.0
    %955 = vmatprep.subr.mxu0 0.0
    %956 = vmatpush1.msra.mxu0 0.0
    %957 = vmatprep.subr.mxu0 0.0
    %958 = vmatpush1.msra.mxu0 0.0
    %959 = vmatprep.mubr.f32.mxu0 0.0
    %960 = vmatmul.mubr.f32.gmra.mrb[0].mxu0 %v893
    %v961 = vpop.f32.mrb[0].mxu0
    %v962 = vadd.f32 0.0, %v961
    %v963 = vpop.f32.mrb[0].mxu0
    %964 = vdwg.mxu0
    %v966 = vsel %vm103, %v882, 0
    %968 = vmatprep.subr.mxu0 0.0
    %969 = vmatpush1.msra.mxu0 %v883
    %970 = vmatprep.subr.mxu0 0.0
    %971 = vmatpush1.msra.mxu0 %v884
    %972 = vmatprep.subr.mxu0 0.0
    %973 = vmatpush1.msra.mxu0 %v885
    %974 = vmatprep.subr.mxu0 0.0
    %975 = vmatpush1.msra.mxu0 %v886
    %976 = vmatprep.subr.mxu0 0.0
    %977 = vmatpush1.msra.mxu0 0.0
    %978 = vmatprep.subr.mxu0 0.0
    %979 = vmatpush1.msra.mxu0 0.0
    %980 = vmatprep.subr.mxu0 0.0
    %981 = vmatpush1.msra.mxu0 0.0
    %982 = vmatprep.subr.mxu0 0.0
    %983 = vmatpush1.msra.mxu0 0.0
    %984 = vmatprep.subr.mxu0 0.0
    %985 = vmatpush1.msra.mxu0 0.0
    %986 = vmatprep.subr.mxu0 0.0
    %987 = vmatpush1.msra.mxu0 0.0
    %988 = vmatprep.subr.mxu0 0.0
    %989 = vmatpush1.msra.mxu0 0.0
    %990 = vmatprep.subr.mxu0 0.0
    %991 = vmatpush1.msra.mxu0 0.0
    %992 = vmatprep.subr.mxu0 0.0
    %993 = vmatpush1.msra.mxu0 0.0
    %994 = vmatprep.subr.mxu0 0.0
    %995 = vmatpush1.msra.mxu0 0.0
    %996 = vmatprep.subr.mxu0 0.0
    %997 = vmatpush1.msra.mxu0 0.0
    %998 = vmatprep.subr.mxu0 0.0
    %999 = vmatpush1.msra.mxu0 0.0
    %1000 = vmatprep.subr.mxu0 0.0
    %1001 = vmatpush1.msra.mxu0 0.0
    %1002 = vmatprep.subr.mxu0 0.0
    %1003 = vmatpush1.msra.mxu0 0.0
    %1004 = vmatprep.subr.mxu0 0.0
    %1005 = vmatpush1.msra.mxu0 0.0
    %1006 = vmatprep.subr.mxu0 0.0
    %1007 = vmatpush1.msra.mxu0 0.0
    %1008 = vmatprep.subr.mxu0 0.0
    %1009 = vmatpush1.msra.mxu0 0.0
    %1010 = vmatprep.subr.mxu0 0.0
    %1011 = vmatpush1.msra.mxu0 0.0
    %1012 = vmatprep.subr.mxu0 0.0
    %1013 = vmatpush1.msra.mxu0 0.0
    %1014 = vmatprep.subr.mxu0 0.0
    %1015 = vmatpush1.msra.mxu0 0.0
    %1016 = vmatprep.subr.mxu0 0.0
    %1017 = vmatpush1.msra.mxu0 0.0
    %1018 = vmatprep.subr.mxu0 0.0
    %1019 = vmatpush1.msra.mxu0 0.0
    %1020 = vmatprep.subr.mxu0 0.0
    %1021 = vmatpush1.msra.mxu0 0.0
    %1022 = vmatprep.subr.mxu0 0.0
    %1023 = vmatpush1.msra.mxu0 0.0
    %1024 = vmatprep.subr.mxu0 0.0
    %1025 = vmatpush1.msra.mxu0 0.0
    %1026 = vmatprep.subr.mxu0 0.0
    %1027 = vmatpush1.msra.mxu0 0.0
    %1028 = vmatprep.subr.mxu0 0.0
    %1029 = vmatpush1.msra.mxu0 0.0
    %1030 = vmatprep.subr.mxu0 0.0
    %1031 = vmatpush1.msra.mxu0 0.0
    %1032 = vmatprep.mubr.f32.mxu0 0.0
    %1033 = vmatmul.mubr.f32.gmra.mrb[0].mxu0 %v966
    %v1034 = vpop.f32.mrb[0].mxu0
    %v1035 = vadd.f32 %v962, %v1034
    %v1036 = vpop.f32.mrb[0].mxu0
    %1037 = vdwg.mxu0
    %v1038 = vadd.f32 %v1035, %v91
    %v1039 = vxor.u32 %v1038, 2147483648
    %v1040 = vmul.f32 %v1039, 1.442695
    %v1041 = vpow.pop %v1040
    %v1042 = vadd.f32 %v1041, 1.0
    %v1043 = vrcp.pop %v1042
    %v1044 = vmul.f32 1.0, %v1043
    %v1045 = vtanh.pop %v1038
    %v1046 = vld [vmem:[#allocation3] sm:$0xff]
    %1048 = vrot.lane.b32.xlu0 %v1046, 32
    %v1049 = vpop.permute.xlu0 %1048
    %v1051 = vmul.f32 %v1044, %v1049
    %1053 = vrot.lane.b32.xlu0 %v1045, 64
    %v1054 = vpop.permute.xlu0 %1053
    %v1056 = vmul.f32 %v1044, %v1054
    %1058 = vrot.lane.b32.xlu0 %v1056, 32
    %v1059 = vpop.permute.xlu0 %1058
    %v1061 = vadd.f32 %v1051, %v1059
    %v1062 = vtanh.pop %v1061
    %1064 = vrot.lane.b32.xlu0 %v1062, 64
    %v1065 = vpop.permute.xlu0 %1064
    %v1067 = vmul.f32 %v1044, %v1065
    %1069 = vrot.lane.b32.xlu0 %v1067, 32
    %v1070 = vpop.permute.xlu0 %1069
    %1072 = vst.msk [vmem:[#allocation2] sm:$0xff] %vm103, %v1070
    %1074 = vrot.lane.b32.xlu0 %v1061, 96
    %v1075 = vpop.permute.xlu0 %1074
    %1077 = vst.msk [vmem:[#allocation3] sm:$0xff] %vm103, %v1075
    %s1078 = scalar_lea.vmem [#allocation4], 40
    %v1079 = vld [vmem:[%s1078] sm:$0xff]
    %v1080 = vld [vmem:[#allocation7] sm:$0xff]
    %v1081 = vld [vmem:[#allocation7 + $0x8] sm:$0xff]
    %v1082 = vld [vmem:[#allocation7 + $0x10] sm:$0xff]
    %v1083 = vld [vmem:[#allocation7 + $0x18] sm:$0xff]
    %v1084 = vld [vmem:[#allocation2] sm:$0xff]
    %v1085 = vld [vmem:[#allocation9] sm:$0xff]
    %v1086 = vld [vmem:[#allocation9 + $0x8] sm:$0xff]
    %v1087 = vld [vmem:[#allocation9 + $0x10] sm:$0xff]
    %v1088 = vld [vmem:[#allocation9 + $0x18] sm:$0xff]
    %v1090 = vsel %vm103, %v1084, 0
    %1092 = vmatprep.subr.mxu0 0.0
    %1093 = vmatpush1.msra.mxu0 %v1085
    %1094 = vmatprep.subr.mxu0 0.0
    %1095 = vmatpush1.msra.mxu0 %v1086
    %1096 = vmatprep.subr.mxu0 0.0
    %1097 = vmatpush1.msra.mxu0 %v1087
    %1098 = vmatprep.subr.mxu0 0.0
    %1099 = vmatpush1.msra.mxu0 %v1088
    %1100 = vmatprep.subr.mxu0 0.0
    %1101 = vmatpush1.msra.mxu0 0.0
    %1102 = vmatprep.subr.mxu0 0.0
    %1103 = vmatpush1.msra.mxu0 0.0
    %1104 = vmatprep.subr.mxu0 0.0
    %1105 = vmatpush1.msra.mxu0 0.0
    %1106 = vmatprep.subr.mxu0 0.0
    %1107 = vmatpush1.msra.mxu0 0.0
    %1108 = vmatprep.subr.mxu0 0.0
    %1109 = vmatpush1.msra.mxu0 0.0
    %1110 = vmatprep.subr.mxu0 0.0
    %1111 = vmatpush1.msra.mxu0 0.0
    %1112 = vmatprep.subr.mxu0 0.0
    %1113 = vmatpush1.msra.mxu0 0.0
    %1114 = vmatprep.subr.mxu0 0.0
    %1115 = vmatpush1.msra.mxu0 0.0
    %1116 = vmatprep.subr.mxu0 0.0
    %1117 = vmatpush1.msra.mxu0 0.0
    %1118 = vmatprep.subr.mxu0 0.0
    %1119 = vmatpush1.msra.mxu0 0.0
    %1120 = vmatprep.subr.mxu0 0.0
    %1121 = vmatpush1.msra.mxu0 0.0
    %1122 = vmatprep.subr.mxu0 0.0
    %1123 = vmatpush1.msra.mxu0 0.0
    %1124 = vmatprep.subr.mxu0 0.0
    %1125 = vmatpush1.msra.mxu0 0.0
    %1126 = vmatprep.subr.mxu0 0.0
    %1127 = vmatpush1.msra.mxu0 0.0
    %1128 = vmatprep.subr.mxu0 0.0
    %1129 = vmatpush1.msra.mxu0 0.0
    %1130 = vmatprep.subr.mxu0 0.0
    %1131 = vmatpush1.msra.mxu0 0.0
    %1132 = vmatprep.subr.mxu0 0.0
    %1133 = vmatpush1.msra.mxu0 0.0
    %1134 = vmatprep.subr.mxu0 0.0
    %1135 = vmatpush1.msra.mxu0 0.0
    %1136 = vmatprep.subr.mxu0 0.0
    %1137 = vmatpush1.msra.mxu0 0.0
    %1138 = vmatprep.subr.mxu0 0.0
    %1139 = vmatpush1.msra.mxu0 0.0
    %1140 = vmatprep.subr.mxu0 0.0
    %1141 = vmatpush1.msra.mxu0 0.0
    %1142 = vmatprep.subr.mxu0 0.0
    %1143 = vmatpush1.msra.mxu0 0.0
    %1144 = vmatprep.subr.mxu0 0.0
    %1145 = vmatpush1.msra.mxu0 0.0
    %1146 = vmatprep.subr.mxu0 0.0
    %1147 = vmatpush1.msra.mxu0 0.0
    %1148 = vmatprep.subr.mxu0 0.0
    %1149 = vmatpush1.msra.mxu0 0.0
    %1150 = vmatprep.subr.mxu0 0.0
    %1151 = vmatpush1.msra.mxu0 0.0
    %1152 = vmatprep.subr.mxu0 0.0
    %1153 = vmatpush1.msra.mxu0 0.0
    %1154 = vmatprep.subr.mxu0 0.0
    %1155 = vmatpush1.msra.mxu0 0.0
    %1156 = vmatprep.mubr.f32.mxu0 0.0
    %1157 = vmatmul.mubr.f32.gmra.mrb[0].mxu0 %v1090
    %v1158 = vpop.f32.mrb[0].mxu0
    %v1159 = vadd.f32 0.0, %v1158
    %v1160 = vpop.f32.mrb[0].mxu0
    %1161 = vdwg.mxu0
    %v1163 = vsel %vm103, %v1079, 0
    %1165 = vmatprep.subr.mxu0 0.0
    %1166 = vmatpush1.msra.mxu0 %v1080
    %1167 = vmatprep.subr.mxu0 0.0
    %1168 = vmatpush1.msra.mxu0 %v1081
    %1169 = vmatprep.subr.mxu0 0.0
    %1170 = vmatpush1.msra.mxu0 %v1082
    %1171 = vmatprep.subr.mxu0 0.0
    %1172 = vmatpush1.msra.mxu0 %v1083
    %1173 = vmatprep.subr.mxu0 0.0
    %1174 = vmatpush1.msra.mxu0 0.0
    %1175 = vmatprep.subr.mxu0 0.0
    %1176 = vmatpush1.msra.mxu0 0.0
    %1177 = vmatprep.subr.mxu0 0.0
    %1178 = vmatpush1.msra.mxu0 0.0
    %1179 = vmatprep.subr.mxu0 0.0
    %1180 = vmatpush1.msra.mxu0 0.0
    %1181 = vmatprep.subr.mxu0 0.0
    %1182 = vmatpush1.msra.mxu0 0.0
    %1183 = vmatprep.subr.mxu0 0.0
    %1184 = vmatpush1.msra.mxu0 0.0
    %1185 = vmatprep.subr.mxu0 0.0
    %1186 = vmatpush1.msra.mxu0 0.0
    %1187 = vmatprep.subr.mxu0 0.0
    %1188 = vmatpush1.msra.mxu0 0.0
    %1189 = vmatprep.subr.mxu0 0.0
    %1190 = vmatpush1.msra.mxu0 0.0
    %1191 = vmatprep.subr.mxu0 0.0
    %1192 = vmatpush1.msra.mxu0 0.0
    %1193 = vmatprep.subr.mxu0 0.0
    %1194 = vmatpush1.msra.mxu0 0.0
    %1195 = vmatprep.subr.mxu0 0.0
    %1196 = vmatpush1.msra.mxu0 0.0
    %1197 = vmatprep.subr.mxu0 0.0
    %1198 = vmatpush1.msra.mxu0 0.0
    %1199 = vmatprep.subr.mxu0 0.0
    %1200 = vmatpush1.msra.mxu0 0.0
    %1201 = vmatprep.subr.mxu0 0.0
    %1202 = vmatpush1.msra.mxu0 0.0
    %1203 = vmatprep.subr.mxu0 0.0
    %1204 = vmatpush1.msra.mxu0 0.0
    %1205 = vmatprep.subr.mxu0 0.0
    %1206 = vmatpush1.msra.mxu0 0.0
    %1207 = vmatprep.subr.mxu0 0.0
    %1208 = vmatpush1.msra.mxu0 0.0
    %1209 = vmatprep.subr.mxu0 0.0
    %1210 = vmatpush1.msra.mxu0 0.0
    %1211 = vmatprep.subr.mxu0 0.0
    %1212 = vmatpush1.msra.mxu0 0.0
    %1213 = vmatprep.subr.mxu0 0.0
    %1214 = vmatpush1.msra.mxu0 0.0
    %1215 = vmatprep.subr.mxu0 0.0
    %1216 = vmatpush1.msra.mxu0 0.0
    %1217 = vmatprep.subr.mxu0 0.0
    %1218 = vmatpush1.msra.mxu0 0.0
    %1219 = vmatprep.subr.mxu0 0.0
    %1220 = vmatpush1.msra.mxu0 0.0
    %1221 = vmatprep.subr.mxu0 0.0
    %1222 = vmatpush1.msra.mxu0 0.0
    %1223 = vmatprep.subr.mxu0 0.0
    %1224 = vmatpush1.msra.mxu0 0.0
    %1225 = vmatprep.subr.mxu0 0.0
    %1226 = vmatpush1.msra.mxu0 0.0
    %1227 = vmatprep.subr.mxu0 0.0
    %1228 = vmatpush1.msra.mxu0 0.0
    %1229 = vmatprep.mubr.f32.mxu0 0.0
    %1230 = vmatmul.mubr.f32.gmra.mrb[0].mxu0 %v1163
    %v1231 = vpop.f32.mrb[0].mxu0
    %v1232 = vadd.f32 %v1159, %v1231
    %v1233 = vpop.f32.mrb[0].mxu0
    %1234 = vdwg.mxu0
    %v1235 = vadd.f32 %v1232, %v91
    %v1236 = vxor.u32 %v1235, 2147483648
    %v1237 = vmul.f32 %v1236, 1.442695
    %v1238 = vpow.pop %v1237
    %v1239 = vadd.f32 %v1238, 1.0
    %v1240 = vrcp.pop %v1239
    %v1241 = vmul.f32 1.0, %v1240
    %v1242 = vtanh.pop %v1235
    %v1243 = vld [vmem:[#allocation3] sm:$0xff]
    %1245 = vrot.lane.b32.xlu0 %v1243, 32
    %v1246 = vpop.permute.xlu0 %1245
    %v1248 = vmul.f32 %v1241, %v1246
    %1250 = vrot.lane.b32.xlu0 %v1242, 64
    %v1251 = vpop.permute.xlu0 %1250
    %v1253 = vmul.f32 %v1241, %v1251
    %1255 = vrot.lane.b32.xlu0 %v1253, 32
    %v1256 = vpop.permute.xlu0 %1255
    %v1258 = vadd.f32 %v1248, %v1256
    %v1259 = vtanh.pop %v1258
    %1261 = vrot.lane.b32.xlu0 %v1259, 64
    %v1262 = vpop.permute.xlu0 %1261
    %v1264 = vmul.f32 %v1241, %v1262
    %1266 = vrot.lane.b32.xlu0 %v1264, 32
    %v1267 = vpop.permute.xlu0 %1266
    %1269 = vst.msk [vmem:[#allocation2] sm:$0xff] %vm103, %v1267
    %1271 = vrot.lane.b32.xlu0 %v1258, 96
    %v1272 = vpop.permute.xlu0 %1271
    %1274 = vst.msk [vmem:[#allocation3] sm:$0xff] %vm103, %v1272
    %s1275 = scalar_lea.vmem [#allocation4], 48
    %v1276 = vld [vmem:[%s1275] sm:$0xff]
    %v1277 = vld [vmem:[#allocation7] sm:$0xff]
    %v1278 = vld [vmem:[#allocation7 + $0x8] sm:$0xff]
    %v1279 = vld [vmem:[#allocation7 + $0x10] sm:$0xff]
    %v1280 = vld [vmem:[#allocation7 + $0x18] sm:$0xff]
    %v1281 = vld [vmem:[#allocation2] sm:$0xff]
    %v1282 = vld [vmem:[#allocation9] sm:$0xff]
    %v1283 = vld [vmem:[#allocation9 + $0x8] sm:$0xff]
    %v1284 = vld [vmem:[#allocation9 + $0x10] sm:$0xff]
    %v1285 = vld [vmem:[#allocation9 + $0x18] sm:$0xff]
    %v1287 = vsel %vm103, %v1281, 0
    %1289 = vmatprep.subr.mxu0 0.0
    %1290 = vmatpush1.msra.mxu0 %v1282
    %1291 = vmatprep.subr.mxu0 0.0
    %1292 = vmatpush1.msra.mxu0 %v1283
    %1293 = vmatprep.subr.mxu0 0.0
    %1294 = vmatpush1.msra.mxu0 %v1284
    %1295 = vmatprep.subr.mxu0 0.0
    %1296 = vmatpush1.msra.mxu0 %v1285
    %1297 = vmatprep.subr.mxu0 0.0
    %1298 = vmatpush1.msra.mxu0 0.0
    %1299 = vmatprep.subr.mxu0 0.0
    %1300 = vmatpush1.msra.mxu0 0.0
    %1301 = vmatprep.subr.mxu0 0.0
    %1302 = vmatpush1.msra.mxu0 0.0
    %1303 = vmatprep.subr.mxu0 0.0
    %1304 = vmatpush1.msra.mxu0 0.0
    %1305 = vmatprep.subr.mxu0 0.0
    %1306 = vmatpush1.msra.mxu0 0.0
    %1307 = vmatprep.subr.mxu0 0.0
    %1308 = vmatpush1.msra.mxu0 0.0
    %1309 = vmatprep.subr.mxu0 0.0
    %1310 = vmatpush1.msra.mxu0 0.0
    %1311 = vmatprep.subr.mxu0 0.0
    %1312 = vmatpush1.msra.mxu0 0.0
    %1313 = vmatprep.subr.mxu0 0.0
    %1314 = vmatpush1.msra.mxu0 0.0
    %1315 = vmatprep.subr.mxu0 0.0
    %1316 = vmatpush1.msra.mxu0 0.0
    %1317 = vmatprep.subr.mxu0 0.0
    %1318 = vmatpush1.msra.mxu0 0.0
    %1319 = vmatprep.subr.mxu0 0.0
    %1320 = vmatpush1.msra.mxu0 0.0
    %1321 = vmatprep.subr.mxu0 0.0
    %1322 = vmatpush1.msra.mxu0 0.0
    %1323 = vmatprep.subr.mxu0 0.0
    %1324 = vmatpush1.msra.mxu0 0.0
    %1325 = vmatprep.subr.mxu0 0.0
    %1326 = vmatpush1.msra.mxu0 0.0
    %1327 = vmatprep.subr.mxu0 0.0
    %1328 = vmatpush1.msra.mxu0 0.0
    %1329 = vmatprep.subr.mxu0 0.0
    %1330 = vmatpush1.msra.mxu0 0.0
    %1331 = vmatprep.subr.mxu0 0.0
    %1332 = vmatpush1.msra.mxu0 0.0
    %1333 = vmatprep.subr.mxu0 0.0
    %1334 = vmatpush1.msra.mxu0 0.0
    %1335 = vmatprep.subr.mxu0 0.0
    %1336 = vmatpush1.msra.mxu0 0.0
    %1337 = vmatprep.subr.mxu0 0.0
    %1338 = vmatpush1.msra.mxu0 0.0
    %1339 = vmatprep.subr.mxu0 0.0
    %1340 = vmatpush1.msra.mxu0 0.0
    %1341 = vmatprep.subr.mxu0 0.0
    %1342 = vmatpush1.msra.mxu0 0.0
    %1343 = vmatprep.subr.mxu0 0.0
    %1344 = vmatpush1.msra.mxu0 0.0
    %1345 = vmatprep.subr.mxu0 0.0
    %1346 = vmatpush1.msra.mxu0 0.0
    %1347 = vmatprep.subr.mxu0 0.0
    %1348 = vmatpush1.msra.mxu0 0.0
    %1349 = vmatprep.subr.mxu0 0.0
    %1350 = vmatpush1.msra.mxu0 0.0
    %1351 = vmatprep.subr.mxu0 0.0
    %1352 = vmatpush1.msra.mxu0 0.0
    %1353 = vmatprep.mubr.f32.mxu0 0.0
    %1354 = vmatmul.mubr.f32.gmra.mrb[0].mxu0 %v1287
    %v1355 = vpop.f32.mrb[0].mxu0
    %v1356 = vadd.f32 0.0, %v1355
    %v1357 = vpop.f32.mrb[0].mxu0
    %1358 = vdwg.mxu0
    %v1360 = vsel %vm103, %v1276, 0
    %1362 = vmatprep.subr.mxu0 0.0
    %1363 = vmatpush1.msra.mxu0 %v1277
    %1364 = vmatprep.subr.mxu0 0.0
    %1365 = vmatpush1.msra.mxu0 %v1278
    %1366 = vmatprep.subr.mxu0 0.0
    %1367 = vmatpush1.msra.mxu0 %v1279
    %1368 = vmatprep.subr.mxu0 0.0
    %1369 = vmatpush1.msra.mxu0 %v1280
    %1370 = vmatprep.subr.mxu0 0.0
    %1371 = vmatpush1.msra.mxu0 0.0
    %1372 = vmatprep.subr.mxu0 0.0
    %1373 = vmatpush1.msra.mxu0 0.0
    %1374 = vmatprep.subr.mxu0 0.0
    %1375 = vmatpush1.msra.mxu0 0.0
    %1376 = vmatprep.subr.mxu0 0.0
    %1377 = vmatpush1.msra.mxu0 0.0
    %1378 = vmatprep.subr.mxu0 0.0
    %1379 = vmatpush1.msra.mxu0 0.0
    %1380 = vmatprep.subr.mxu0 0.0
    %1381 = vmatpush1.msra.mxu0 0.0
    %1382 = vmatprep.subr.mxu0 0.0
    %1383 = vmatpush1.msra.mxu0 0.0
    %1384 = vmatprep.subr.mxu0 0.0
    %1385 = vmatpush1.msra.mxu0 0.0
    %1386 = vmatprep.subr.mxu0 0.0
    %1387 = vmatpush1.msra.mxu0 0.0
    %1388 = vmatprep.subr.mxu0 0.0
    %1389 = vmatpush1.msra.mxu0 0.0
    %1390 = vmatprep.subr.mxu0 0.0
    %1391 = vmatpush1.msra.mxu0 0.0
    %1392 = vmatprep.subr.mxu0 0.0
    %1393 = vmatpush1.msra.mxu0 0.0
    %1394 = vmatprep.subr.mxu0 0.0
    %1395 = vmatpush1.msra.mxu0 0.0
    %1396 = vmatprep.subr.mxu0 0.0
    %1397 = vmatpush1.msra.mxu0 0.0
    %1398 = vmatprep.subr.mxu0 0.0
    %1399 = vmatpush1.msra.mxu0 0.0
    %1400 = vmatprep.subr.mxu0 0.0
    %1401 = vmatpush1.msra.mxu0 0.0
    %1402 = vmatprep.subr.mxu0 0.0
    %1403 = vmatpush1.msra.mxu0 0.0
    %1404 = vmatprep.subr.mxu0 0.0
    %1405 = vmatpush1.msra.mxu0 0.0
    %1406 = vmatprep.subr.mxu0 0.0
    %1407 = vmatpush1.msra.mxu0 0.0
    %1408 = vmatprep.subr.mxu0 0.0
    %1409 = vmatpush1.msra.mxu0 0.0
    %1410 = vmatprep.subr.mxu0 0.0
    %1411 = vmatpush1.msra.mxu0 0.0
    %1412 = vmatprep.subr.mxu0 0.0
    %1413 = vmatpush1.msra.mxu0 0.0
    %1414 = vmatprep.subr.mxu0 0.0
    %1415 = vmatpush1.msra.mxu0 0.0
    %1416 = vmatprep.subr.mxu0 0.0
    %1417 = vmatpush1.msra.mxu0 0.0
    %1418 = vmatprep.subr.mxu0 0.0
    %1419 = vmatpush1.msra.mxu0 0.0
    %1420 = vmatprep.subr.mxu0 0.0
    %1421 = vmatpush1.msra.mxu0 0.0
    %1422 = vmatprep.subr.mxu0 0.0
    %1423 = vmatpush1.msra.mxu0 0.0
    %1424 = vmatprep.subr.mxu0 0.0
    %1425 = vmatpush1.msra.mxu0 0.0
    %1426 = vmatprep.mubr.f32.mxu0 0.0
    %1427 = vmatmul.mubr.f32.gmra.mrb[0].mxu0 %v1360
    %v1428 = vpop.f32.mrb[0].mxu0
    %v1429 = vadd.f32 %v1356, %v1428
    %v1430 = vpop.f32.mrb[0].mxu0
    %1431 = vdwg.mxu0
    %v1432 = vadd.f32 %v1429, %v91
    %v1433 = vxor.u32 %v1432, 2147483648
    %v1434 = vmul.f32 %v1433, 1.442695
    %v1435 = vpow.pop %v1434
    %v1436 = vadd.f32 %v1435, 1.0
    %v1437 = vrcp.pop %v1436
    %v1438 = vmul.f32 1.0, %v1437
    %v1439 = vtanh.pop %v1432
    %v1440 = vld [vmem:[#allocation3] sm:$0xff]
    %1442 = vrot.lane.b32.xlu0 %v1440, 32
    %v1443 = vpop.permute.xlu0 %1442
    %v1445 = vmul.f32 %v1438, %v1443
    %1447 = vrot.lane.b32.xlu0 %v1439, 64
    %v1448 = vpop.permute.xlu0 %1447
    %v1450 = vmul.f32 %v1438, %v1448
    %1452 = vrot.lane.b32.xlu0 %v1450, 32
    %v1453 = vpop.permute.xlu0 %1452
    %v1455 = vadd.f32 %v1445, %v1453
    %v1456 = vtanh.pop %v1455
    %1458 = vrot.lane.b32.xlu0 %v1456, 64
    %v1459 = vpop.permute.xlu0 %1458
    %v1461 = vmul.f32 %v1438, %v1459
    %1463 = vrot.lane.b32.xlu0 %v1461, 32
    %v1464 = vpop.permute.xlu0 %1463
    %1466 = vst.msk [vmem:[#allocation2] sm:$0xff] %vm103, %v1464
    %1468 = vrot.lane.b32.xlu0 %v1455, 96
    %v1469 = vpop.permute.xlu0 %1468
    %1471 = vst.msk [vmem:[#allocation3] sm:$0xff] %vm103, %v1469
    %s1472 = scalar_lea.vmem [#allocation4], 56
    %v1473 = vld [vmem:[%s1472] sm:$0xff]
    %v1474 = vld [vmem:[#allocation7] sm:$0xff]
    %v1475 = vld [vmem:[#allocation7 + $0x8] sm:$0xff]
    %v1476 = vld [vmem:[#allocation7 + $0x10] sm:$0xff]
    %v1477 = vld [vmem:[#allocation7 + $0x18] sm:$0xff]
    %v1478 = vld [vmem:[#allocation2] sm:$0xff]
    %v1479 = vld [vmem:[#allocation9] sm:$0xff]
    %v1480 = vld [vmem:[#allocation9 + $0x8] sm:$0xff]
    %v1481 = vld [vmem:[#allocation9 + $0x10] sm:$0xff]
    %v1482 = vld [vmem:[#allocation9 + $0x18] sm:$0xff]
    %v1484 = vsel %vm103, %v1478, 0
    %1486 = vmatprep.subr.mxu0 0.0
    %1487 = vmatpush1.msra.mxu0 %v1479
    %1488 = vmatprep.subr.mxu0 0.0
    %1489 = vmatpush1.msra.mxu0 %v1480
    %1490 = vmatprep.subr.mxu0 0.0
    %1491 = vmatpush1.msra.mxu0 %v1481
    %1492 = vmatprep.subr.mxu0 0.0
    %1493 = vmatpush1.msra.mxu0 %v1482
    %1494 = vmatprep.subr.mxu0 0.0
    %1495 = vmatpush1.msra.mxu0 0.0
    %1496 = vmatprep.subr.mxu0 0.0
    %1497 = vmatpush1.msra.mxu0 0.0
    %1498 = vmatprep.subr.mxu0 0.0
    %1499 = vmatpush1.msra.mxu0 0.0
    %1500 = vmatprep.subr.mxu0 0.0
    %1501 = vmatpush1.msra.mxu0 0.0
    %1502 = vmatprep.subr.mxu0 0.0
    %1503 = vmatpush1.msra.mxu0 0.0
    %1504 = vmatprep.subr.mxu0 0.0
    %1505 = vmatpush1.msra.mxu0 0.0
    %1506 = vmatprep.subr.mxu0 0.0
    %1507 = vmatpush1.msra.mxu0 0.0
    %1508 = vmatprep.subr.mxu0 0.0
    %1509 = vmatpush1.msra.mxu0 0.0
    %1510 = vmatprep.subr.mxu0 0.0
    %1511 = vmatpush1.msra.mxu0 0.0
    %1512 = vmatprep.subr.mxu0 0.0
    %1513 = vmatpush1.msra.mxu0 0.0
    %1514 = vmatprep.subr.mxu0 0.0
    %1515 = vmatpush1.msra.mxu0 0.0
    %1516 = vmatprep.subr.mxu0 0.0
    %1517 = vmatpush1.msra.mxu0 0.0
    %1518 = vmatprep.subr.mxu0 0.0
    %1519 = vmatpush1.msra.mxu0 0.0
    %1520 = vmatprep.subr.mxu0 0.0
    %1521 = vmatpush1.msra.mxu0 0.0
    %1522 = vmatprep.subr.mxu0 0.0
    %1523 = vmatpush1.msra.mxu0 0.0
    %1524 = vmatprep.subr.mxu0 0.0
    %1525 = vmatpush1.msra.mxu0 0.0
    %1526 = vmatprep.subr.mxu0 0.0
    %1527 = vmatpush1.msra.mxu0 0.0
    %1528 = vmatprep.subr.mxu0 0.0
    %1529 = vmatpush1.msra.mxu0 0.0
    %1530 = vmatprep.subr.mxu0 0.0
    %1531 = vmatpush1.msra.mxu0 0.0
    %1532 = vmatprep.subr.mxu0 0.0
    %1533 = vmatpush1.msra.mxu0 0.0
    %1534 = vmatprep.subr.mxu0 0.0
    %1535 = vmatpush1.msra.mxu0 0.0
    %1536 = vmatprep.subr.mxu0 0.0
    %1537 = vmatpush1.msra.mxu0 0.0
    %1538 = vmatprep.subr.mxu0 0.0
    %1539 = vmatpush1.msra.mxu0 0.0
    %1540 = vmatprep.subr.mxu0 0.0
    %1541 = vmatpush1.msra.mxu0 0.0
    %1542 = vmatprep.subr.mxu0 0.0
    %1543 = vmatpush1.msra.mxu0 0.0
    %1544 = vmatprep.subr.mxu0 0.0
    %1545 = vmatpush1.msra.mxu0 0.0
    %1546 = vmatprep.subr.mxu0 0.0
    %1547 = vmatpush1.msra.mxu0 0.0
    %1548 = vmatprep.subr.mxu0 0.0
    %1549 = vmatpush1.msra.mxu0 0.0
    %1550 = vmatprep.mubr.f32.mxu0 0.0
    %1551 = vmatmul.mubr.f32.gmra.mrb[0].mxu0 %v1484
    %v1552 = vpop.f32.mrb[0].mxu0
    %v1553 = vadd.f32 0.0, %v1552
    %v1554 = vpop.f32.mrb[0].mxu0
    %1555 = vdwg.mxu0
    %v1557 = vsel %vm103, %v1473, 0
    %1559 = vmatprep.subr.mxu0 0.0
    %1560 = vmatpush1.msra.mxu0 %v1474
    %1561 = vmatprep.subr.mxu0 0.0
    %1562 = vmatpush1.msra.mxu0 %v1475
    %1563 = vmatprep.subr.mxu0 0.0
    %1564 = vmatpush1.msra.mxu0 %v1476
    %1565 = vmatprep.subr.mxu0 0.0
    %1566 = vmatpush1.msra.mxu0 %v1477
    %1567 = vmatprep.subr.mxu0 0.0
    %1568 = vmatpush1.msra.mxu0 0.0
    %1569 = vmatprep.subr.mxu0 0.0
    %1570 = vmatpush1.msra.mxu0 0.0
    %1571 = vmatprep.subr.mxu0 0.0
    %1572 = vmatpush1.msra.mxu0 0.0
    %1573 = vmatprep.subr.mxu0 0.0
    %1574 = vmatpush1.msra.mxu0 0.0
    %1575 = vmatprep.subr.mxu0 0.0
    %1576 = vmatpush1.msra.mxu0 0.0
    %1577 = vmatprep.subr.mxu0 0.0
    %1578 = vmatpush1.msra.mxu0 0.0
    %1579 = vmatprep.subr.mxu0 0.0
    %1580 = vmatpush1.msra.mxu0 0.0
    %1581 = vmatprep.subr.mxu0 0.0
    %1582 = vmatpush1.msra.mxu0 0.0
    %1583 = vmatprep.subr.mxu0 0.0
    %1584 = vmatpush1.msra.mxu0 0.0
    %1585 = vmatprep.subr.mxu0 0.0
    %1586 = vmatpush1.msra.mxu0 0.0
    %1587 = vmatprep.subr.mxu0 0.0
    %1588 = vmatpush1.msra.mxu0 0.0
    %1589 = vmatprep.subr.mxu0 0.0
    %1590 = vmatpush1.msra.mxu0 0.0
    %1591 = vmatprep.subr.mxu0 0.0
    %1592 = vmatpush1.msra.mxu0 0.0
    %1593 = vmatprep.subr.mxu0 0.0
    %1594 = vmatpush1.msra.mxu0 0.0
    %1595 = vmatprep.subr.mxu0 0.0
    %1596 = vmatpush1.msra.mxu0 0.0
    %1597 = vmatprep.subr.mxu0 0.0
    %1598 = vmatpush1.msra.mxu0 0.0
    %1599 = vmatprep.subr.mxu0 0.0
    %1600 = vmatpush1.msra.mxu0 0.0
    %1601 = vmatprep.subr.mxu0 0.0
    %1602 = vmatpush1.msra.mxu0 0.0
    %1603 = vmatprep.subr.mxu0 0.0
    %1604 = vmatpush1.msra.mxu0 0.0
    %1605 = vmatprep.subr.mxu0 0.0
    %1606 = vmatpush1.msra.mxu0 0.0
    %1607 = vmatprep.subr.mxu0 0.0
    %1608 = vmatpush1.msra.mxu0 0.0
    %1609 = vmatprep.subr.mxu0 0.0
    %1610 = vmatpush1.msra.mxu0 0.0
    %1611 = vmatprep.subr.mxu0 0.0
    %1612 = vmatpush1.msra.mxu0 0.0
    %1613 = vmatprep.subr.mxu0 0.0
    %1614 = vmatpush1.msra.mxu0 0.0
    %1615 = vmatprep.subr.mxu0 0.0
    %1616 = vmatpush1.msra.mxu0 0.0
    %1617 = vmatprep.subr.mxu0 0.0
    %1618 = vmatpush1.msra.mxu0 0.0
    %1619 = vmatprep.subr.mxu0 0.0
    %1620 = vmatpush1.msra.mxu0 0.0
    %1621 = vmatprep.subr.mxu0 0.0
    %1622 = vmatpush1.msra.mxu0 0.0
    %1623 = vmatprep.mubr.f32.mxu0 0.0
    %1624 = vmatmul.mubr.f32.gmra.mrb[0].mxu0 %v1557
    %v1625 = vpop.f32.mrb[0].mxu0
    %v1626 = vadd.f32 %v1553, %v1625
    %v1627 = vpop.f32.mrb[0].mxu0
    %1628 = vdwg.mxu0
    %v1629 = vadd.f32 %v1626, %v91
    %v1630 = vxor.u32 %v1629, 2147483648
    %v1631 = vmul.f32 %v1630, 1.442695
    %v1632 = vpow.pop %v1631
    %v1633 = vadd.f32 %v1632, 1.0
    %v1634 = vrcp.pop %v1633
    %v1635 = vmul.f32 1.0, %v1634
    %v1636 = vtanh.pop %v1629
    %v1637 = vld [vmem:[#allocation3] sm:$0xff]
    %1639 = vrot.lane.b32.xlu0 %v1637, 32
    %v1640 = vpop.permute.xlu0 %1639
    %v1642 = vmul.f32 %v1635, %v1640
    %1644 = vrot.lane.b32.xlu0 %v1636, 64
    %v1645 = vpop.permute.xlu0 %1644
    %v1647 = vmul.f32 %v1635, %v1645
    %1649 = vrot.lane.b32.xlu0 %v1647, 32
    %v1650 = vpop.permute.xlu0 %1649
    %v1652 = vadd.f32 %v1642, %v1650
    %v1653 = vtanh.pop %v1652
    %1655 = vrot.lane.b32.xlu0 %v1653, 64
    %v1656 = vpop.permute.xlu0 %1655
    %v1658 = vmul.f32 %v1635, %v1656
    %1660 = vrot.lane.b32.xlu0 %v1658, 32
    %v1661 = vpop.permute.xlu0 %1660
    %1663 = vst.msk [vmem:[#allocation2] sm:$0xff] %vm103, %v1661
    %1665 = vrot.lane.b32.xlu0 %v1652, 96
    %v1666 = vpop.permute.xlu0 %1665
    %1668 = vst.msk [vmem:[#allocation3] sm:$0xff] %vm103, %v1666
    // Predicated region
    $region46: #{tpu_custom_call.1} parent=1 // pred_check
      %p1669 = pneg %p79
    $region47: #{tpu_custom_call.1} parent=1 // pred_check_branch
      %1671 = sbr.rel (%p1669) target = $region49
    $region48: #{tpu_custom_call.1} parent=1 // pred_region
      %v1672 = vld [vmem:[#allocation2] sm:$0xff]
      %v1673 = vld [vmem:[#allocation10] sm:$0xff]
      %v1674 = vld [vmem:[#allocation10 + $0x8] sm:$0xff]
      %v1675 = vld [vmem:[#allocation10 + $0x10] sm:$0xff]
      %v1676 = vld [vmem:[#allocation10 + $0x18] sm:$0xff]
      %v1677 = vld [vmem:[%s5] sm:$0x1]
      %v1679 = vlaneseq
      %v1680 = vshrl.u32 %v1679, 7
      %v1681 = vsub.s32 0, %v1680
      %v1682 = vrot.slane %v1677, %v1681
      %v1685 = vsel %vm103, %v1672, 0
      %1687 = vmatprep.subr.mxu0 0.0
      %1688 = vmatpush1.msra.mxu0 %v1673
      %1689 = vmatprep.subr.mxu0 0.0
      %1690 = vmatpush1.msra.mxu0 %v1674
      %1691 = vmatprep.subr.mxu0 0.0
      %1692 = vmatpush1.msra.mxu0 %v1675
      %1693 = vmatprep.subr.mxu0 0.0
      %1694 = vmatpush1.msra.mxu0 %v1676
      %1695 = vmatprep.subr.mxu0 0.0
      %1696 = vmatpush1.msra.mxu0 0.0
      %1697 = vmatprep.subr.mxu0 0.0
      %1698 = vmatpush1.msra.mxu0 0.0
      %1699 = vmatprep.subr.mxu0 0.0
      %1700 = vmatpush1.msra.mxu0 0.0
      %1701 = vmatprep.subr.mxu0 0.0
      %1702 = vmatpush1.msra.mxu0 0.0
      %1703 = vmatprep.subr.mxu0 0.0
      %1704 = vmatpush1.msra.mxu0 0.0
      %1705 = vmatprep.subr.mxu0 0.0
      %1706 = vmatpush1.msra.mxu0 0.0
      %1707 = vmatprep.subr.mxu0 0.0
      %1708 = vmatpush1.msra.mxu0 0.0
      %1709 = vmatprep.subr.mxu0 0.0
      %1710 = vmatpush1.msra.mxu0 0.0
      %1711 = vmatprep.subr.mxu0 0.0
      %1712 = vmatpush1.msra.mxu0 0.0
      %1713 = vmatprep.subr.mxu0 0.0
      %1714 = vmatpush1.msra.mxu0 0.0
      %1715 = vmatprep.subr.mxu0 0.0
      %1716 = vmatpush1.msra.mxu0 0.0
      %1717 = vmatprep.subr.mxu0 0.0
      %1718 = vmatpush1.msra.mxu0 0.0
      %1719 = vmatprep.subr.mxu0 0.0
      %1720 = vmatpush1.msra.mxu0 0.0
      %1721 = vmatprep.subr.mxu0 0.0
      %1722 = vmatpush1.msra.mxu0 0.0
      %1723 = vmatprep.subr.mxu0 0.0
      %1724 = vmatpush1.msra.mxu0 0.0
      %1725 = vmatprep.subr.mxu0 0.0
      %1726 = vmatpush1.msra.mxu0 0.0
      %1727 = vmatprep.subr.mxu0 0.0
      %1728 = vmatpush1.msra.mxu0 0.0
      %1729 = vmatprep.subr.mxu0 0.0
      %1730 = vmatpush1.msra.mxu0 0.0
      %1731 = vmatprep.subr.mxu0 0.0
      %1732 = vmatpush1.msra.mxu0 0.0
      %1733 = vmatprep.subr.mxu0 0.0
      %1734 = vmatpush1.msra.mxu0 0.0
      %1735 = vmatprep.subr.mxu0 0.0
      %1736 = vmatpush1.msra.mxu0 0.0
      %1737 = vmatprep.subr.mxu0 0.0
      %1738 = vmatpush1.msra.mxu0 0.0
      %1739 = vmatprep.subr.mxu0 0.0
      %1740 = vmatpush1.msra.mxu0 0.0
      %1741 = vmatprep.subr.mxu0 0.0
      %1742 = vmatpush1.msra.mxu0 0.0
      %1743 = vmatprep.subr.mxu0 0.0
      %1744 = vmatpush1.msra.mxu0 0.0
      %1745 = vmatprep.subr.mxu0 0.0
      %1746 = vmatpush1.msra.mxu0 0.0
      %1747 = vmatprep.subr.mxu0 0.0
      %1748 = vmatpush1.msra.mxu0 0.0
      %1749 = vmatprep.subr.mxu0 0.0
      %1750 = vmatpush1.msra.mxu0 0.0
      %1751 = vmatprep.mubr.f32.mxu0 0.0
      %1752 = vmatmul.mubr.f32.gmra.mrb[0].mxu0 %v1685
      %v1753 = vpop.f32.mrb[0].mxu0
      %v1754 = vadd.f32 %v1682, %v1753
      %v1755 = vpop.f32.mrb[0].mxu0
      %1756 = vdwg.mxu0
      %1757 = vst [vmem:[#allocation12] sm:$0xff] %v1754
    $region49: #{tpu_custom_call.1} parent=1 // pred_fallthru
      _
    // Predicated region
    $region50: #{tpu_custom_call.1} parent=1 // pred_check
      _
    $region51: #{tpu_custom_call.1} parent=1 // pred_check_branch
      %1759 = sbr.rel (0) target = $region53
    $region52: #{tpu_custom_call.1} parent=1 // pred_region
      %s1761 = ssub.s32 128, 128
      %1762 = vsyncadd [#allocation6], %s1761
      %s1764 = sshll.u32 [#allocation12], 4
      %s1765 = int_to_ptr.vmem [resolvable:$true] %s1764
      %1767 = dma.vmem_to_hbm [thread:$0]  %s1765, 128, %s6, [#allocation6]
    $region53: #{tpu_custom_call.1} parent=1 // pred_fallthru
      _
    // Predicated region
    $region54: #{tpu_custom_call.1} parent=1 // pred_check
      _
    $region55: #{tpu_custom_call.1} parent=1 // pred_check_branch
      %1769 = sbr.rel (0) target = $region57
    $region56: #{tpu_custom_call.1} parent=1 // pred_region
      %1770 = dma.done [#allocation6], 128
    $region57: #{tpu_custom_call.1} parent=1 // pred_fallthru
      _
    %1771 = vsyncpa [#allocation5], 1
    %1772 = vsyncpa [#allocation8], 1
    %1773 = vsyncpa [#allocation11], 1
    %1774 = vsyncpa [#allocation6], 1

</llo_original>
